<compile_context>
chip_gen: v7x
topology: tpu7x:2x2x1
jax: 0.10.0
libtpu: 0.0.40
codegen_flags: <defaults>
</compile_context>

<pallas_src>
import math
import numpy as np

import jax
import jax.numpy as jnp
from jax import lax
from jax.experimental import pallas as pl
from jax.experimental.pallas import tpu as pltpu

SHIFT = 0
REDUCE = 1


# -----------------------------------------------------------------------------
# Host-side schedule builder: turn the transition sequence into index tables.
# -----------------------------------------------------------------------------
def build_schedule(transitions, T):
    """transitions: [S, B] host array of SHIFT/REDUCE.  Returns int32 tables.

    op  (S, B, 1): the transition (-1 => no-op)
    src (S, B, 1): buffer token index consumed by a SHIFT
    dst (S, B, 1): stack slot written this step (for a REDUCE, the left child
                   is slot dst and the right child is slot dst + 1)
    fin (B, 1)   : final root stack slot per batch row
    red (S,)     : 1 iff any batch row reduces this step
    """
    transitions = np.asarray(transitions)
    S, B = transitions.shape
    op = np.full((S, B, 1), -1, np.int32)
    src = np.zeros((S, B, 1), np.int32)
    dst = np.zeros((S, B, 1), np.int32)
    fin = np.zeros((B, 1), np.int32)
    red = np.zeros((S,), np.int32)

    buf_top = [T] * B            # buffers are popped from the end (x reversed)
    sp = [0] * B                 # stack pointer per batch row
    for s in range(S):
        for b in range(B):
            t = int(transitions[s, b])
            op[s, b, 0] = t
            if t == SHIFT:
                buf_top[b] -= 1
                assert buf_top[b] >= 0, "Buffer exhausted!"
                src[s, b, 0] = buf_top[b]
                dst[s, b, 0] = sp[b]
                sp[b] += 1
            elif t == REDUCE:
                assert sp[b] >= 2, "Stack too small!"
                dst[s, b, 0] = sp[b] - 2
                sp[b] -= 1
                red[s] = 1
    for b in range(B):
        fin[b, 0] = max(sp[b] - 1, 0)
    return op, src, dst, fin, red


# -----------------------------------------------------------------------------
# The single Pallas kernel: buffer projection + full vectorized stack machine.
# -----------------------------------------------------------------------------
def _tree_lstm_kernel(
    # schedule (VMEM int32 tables + SMEM per-step flag)
    op_ref, src_ref, dst_ref, fin_ref, red_ref,
    # tensors / weights (VMEM, resident)
    x_ref, wx_ref, bx_ref, wg_ref, bg_ref, wl_ref, wr_ref, br_ref,
    # output
    out_ref,
    # scratch: slot-major h/c planes (T, B, H)
    buf_h, buf_c, stack_h, stack_c,
):
    T, B, H = buf_h.shape
    S = op_ref.shape[0]

    # ---------------- init: zero stack, project every buffer token ----------
    stack_h[...] = jnp.zeros_like(stack_h)
    stack_c[...] = jnp.zeros_like(stack_c)

    x2d = x_ref[...]                                   # (T*B, E), row = t*B + b
    c_all = jnp.dot(x2d, wx_ref[...],
                    preferred_element_type=jnp.float32) + bx_ref[...]
    gate = jax.nn.sigmoid(
        jnp.dot(x2d, wg_ref[...],
                preferred_element_type=jnp.float32) + bg_ref[...])
    h_all = gate * jnp.tanh(c_all)
    for t in range(T):                                 # init-only static unroll
        buf_c[t] = c_all[t * B:(t + 1) * B, :]
        buf_h[t] = h_all[t * B:(t + 1) * B, :]

    # one-hot helper over the slot axis, hoisted out of the step loop
    slot_iota = lax.broadcasted_iota(jnp.int32, (T, B, 1), 0)

    # ---------------- the shift-reduce stack machine -------------------------
    @pl.loop(0, S)
    def _step(s):
        opc = op_ref[s]                                # (B, 1) int32
        srcc = src_ref[s]                              # (B, 1)
        dstc = dst_ref[s][None, :, :]                  # (1, B, 1)

        is_shift = (opc == SHIFT)[None, :, :]          # (1, B, 1) bool
        is_reduce = (opc == REDUCE)[None, :, :]
        dst_onehot = slot_iota == dstc                 # (T, B, 1)

        # --- SHIFT rows: gather projected token, push onto the stack --------
        src_onehot = slot_iota == srcc[None, :, :]
        bh = buf_h[...]
        bc = buf_c[...]
        sh_h = jnp.sum(jnp.where(src_onehot, bh, 0.0), axis=0)      # (B, H)
        sh_c = jnp.sum(jnp.where(src_onehot, bc, 0.0), axis=0)
        shift_mask = jnp.logical_and(dst_onehot, is_shift)
        stack_h[...] = jnp.where(shift_mask, sh_h[None, :, :], stack_h[...])
        stack_c[...] = jnp.where(shift_mask, sh_c[None, :, :], stack_c[...])

        # --- REDUCE rows: batched TreeLSTM cell (skipped if nobody reduces) -
        @pl.when(red_ref[s] > 0)
        def _reduce():
            left_onehot = dst_onehot                   # left child slot == dst
            right_onehot = slot_iota == dstc + 1       # right child slot
            st_h = stack_h[...]
            st_c = stack_c[...]
            h_l = jnp.sum(jnp.where(left_onehot, st_h, 0.0), axis=0)
            c_l = jnp.sum(jnp.where(left_onehot, st_c, 0.0), axis=0)
            h_r = jnp.sum(jnp.where(right_onehot, st_h, 0.0), axis=0)
            c_r = jnp.sum(jnp.where(right_onehot, st_c, 0.0), axis=0)

            # no concat(h_l, h_r): weight pre-split, two accumulated MXU dots
            proj = (jnp.dot(h_l, wl_ref[...], preferred_element_type=jnp.float32)
                    + jnp.dot(h_r, wr_ref[...], preferred_element_type=jnp.float32)
                    + br_ref[...])
            i_g = jax.nn.sigmoid(proj[:, 0 * H:1 * H])
            f_l = jax.nn.sigmoid(proj[:, 1 * H:2 * H])
            f_r = jax.nn.sigmoid(proj[:, 2 * H:3 * H])
            g_g = jnp.tanh(proj[:, 3 * H:4 * H])
            o_g = jax.nn.sigmoid(proj[:, 4 * H:5 * H])
            c_new = f_l * c_l + f_r * c_r + i_g * g_g
            h_new = o_g * jnp.tanh(c_new)

            reduce_mask = jnp.logical_and(dst_onehot, is_reduce)
            stack_h[...] = jnp.where(reduce_mask, h_new[None, :, :], stack_h[...])
            stack_c[...] = jnp.where(reduce_mask, c_new[None, :, :], stack_c[...])

    # ---------------- emit the root h for every batch row (one dense store) --
    fin_onehot = slot_iota == fin_ref[...][None, :, :]
    out_ref[...] = jnp.sum(jnp.where(fin_onehot, stack_h[...], 0.0), axis=0)


def _pallas_tree_lstm(op, src, dst, fin, red, x_tb, wx, bx, wg, bg, wl, wrr, br):
    B = fin.shape[0]
    TB, _ = x_tb.shape
    T = TB // B
    H = wx.shape[1]

    vmem = pl.BlockSpec(memory_space=pltpu.MemorySpace.VMEM)
    smem = pl.BlockSpec(memory_space=pltpu.MemorySpace.SMEM)

    return pl.pallas_call(
        _tree_lstm_kernel,
        out_shape=jax.ShapeDtypeStruct((B, H), jnp.float32),
        in_specs=[vmem, vmem, vmem, vmem, smem,        # op, src, dst, fin, red
                  vmem, vmem, vmem, vmem, vmem,        # x, wx, bx, wg, bg
                  vmem, vmem, vmem],                   # wl, wr, br
        out_specs=vmem,
        scratch_shapes=[
            pltpu.VMEM((T, B, H), jnp.float32),        # buf_h
            pltpu.VMEM((T, B, H), jnp.float32),        # buf_c
            pltpu.VMEM((T, B, H), jnp.float32),        # stack_h
            pltpu.VMEM((T, B, H), jnp.float32),        # stack_c
        ],
    )(op, src, dst, fin, red, x_tb, wx, bx, wg, bg, wl, wrr, br)


@jax.jit
def tree_lstm_forward_pallas(x, schedule, params):
    """x: [B, T, E]; schedule: int32 tables from build_schedule()."""
    op, src, dst, fin, red = schedule
    B, T, E = x.shape
    H = params["wx"].shape[1]
    # token-major flattening: row t*B + b  <->  x[b, t, :]
    x_tb = jnp.transpose(x, (1, 0, 2)).reshape(T * B, E)
    wl = params["wr"][:H, :]                           # (H, 5H)
    wrr = params["wr"][H:, :]                          # (H, 5H)
    return _pallas_tree_lstm(op, src, dst, fin, red, x_tb,
                             params["wx"], params["bx"],
                             params["wg"], params["bg"],
                             wl, wrr, params["br"])


# -----------------------------------------------------------------------------
# Pure-JAX reference (host shift-reduce loop, same semantics as PyTorch)
# -----------------------------------------------------------------------------
def _ref_project_buffers(x2d, wx, bx, wg, bg):
    c = x2d @ wx + bx
    h = jnp.tanh(c)
    gate = jax.nn.sigmoid(x2d @ wg + bg)
    return jnp.concatenate([gate * h, c], axis=-1)


def _ref_reduce_cell(h_l, c_l, h_r, c_r, w, b):
    children = jnp.concatenate([h_l, h_r], axis=-1)
    proj = children @ w + b
    i, fl, fr, g, o = jnp.split(proj, 5, axis=-1)
    c = (jax.nn.sigmoid(fl) * c_l + jax.nn.sigmoid(fr) * c_r
         + jax.nn.sigmoid(i) * jnp.tanh(g))
    h = jax.nn.sigmoid(o) * jnp.tanh(c)
    return h, c


def tree_lstm_forward_reference(x, transitions, params):
    B, T, E = x.shape
    H = params["wx"].shape[1]
    x2d = x.reshape(B * T, E)
    buf = _ref_project_buffers(x2d, params["wx"], params["bx"],
                               params["wg"], params["bg"]).reshape(B, T, 2 * H)
    buffers = [[buf[b, t:t + 1] for t in range(T)] for b in range(B)]
    stacks = [[] for _ in range(B)]
    for t_batch in transitions:
        child_l, child_r = [], []
        for transition, buffer, stack in zip(t_batch, buffers, stacks):
            if transition == SHIFT:
                stack.append(buffer.pop())
            elif transition == REDUCE:
                assert len(stack) >= 2, "Stack too small!"
                child_r.append(stack.pop())
                child_l.append(stack.pop())
        if child_l:
            hl, cl = jnp.split(jnp.concatenate(child_l, axis=0), 2, axis=1)
            hr, cr = jnp.split(jnp.concatenate(child_r, axis=0), 2, axis=1)
            h, c = _ref_reduce_cell(hl, cl, hr, cr, params["wr"], params["br"])
            hc = jnp.concatenate([h, c], axis=1)
            reduced = iter([hc[i:i + 1] for i in range(hc.shape[0])])
            for transition, stack in zip(t_batch, stacks):
                if transition == REDUCE:
                    stack.append(next(reduced))
    final = [stack.pop()[:, :H] for stack in stacks]
    return jnp.concatenate(final, axis=0)  # [B, H]


# -----------------------------------------------------------------------------
# Deterministic parameter init (shapes from the PyTorch module __init__)
# -----------------------------------------------------------------------------
def init_params(key, input_size, hidden_size):
    E, H = input_size, hidden_size
    k_cell = 1.0 / math.sqrt(H)   # TreeLSTMCell.reset_parameters
    k_proj = 1.0 / math.sqrt(E)   # nn.Linear default
    ks = jax.random.split(key, 6)
    u = lambda k, shape, s: jax.random.uniform(
        k, shape, jnp.float32, minval=-s, maxval=s)
    return {
        "wx": u(ks[0], (E, H), k_proj),          # proj_x : E -> H
        "bx": u(ks[1], (1, H), k_proj),
        "wg": u(ks[2], (E, H), k_proj),          # proj_x_gate : E -> H
        "bg": u(ks[3], (1, H), k_proj),
        "wr": u(ks[4], (2 * H, 5 * H), k_cell),  # reduce_layer : 2H -> 5H
        "br": u(ks[5], (1, 5 * H), k_cell),
    }


if __name__ == "__main__":
    B, T, E, H = 2, 8, 16, 32

    key = jax.random.PRNGKey(0)
    k_x, k_p = jax.random.split(key)
    x = jax.random.normal(k_x, (B, T, E), dtype=jnp.float32)
    params = init_params(k_p, E, H)

    # Valid transition sequences: T shifts + (T-1) reduces each, length 2T-1.
    trans_left = [0, 0] + [1, 0] * (T - 2) + [1]           # left-branching
    trans_right = [0] * T + [1] * (T - 1)                   # shifts then reduces
    transitions = np.stack([trans_left, trans_right], axis=1).astype(np.int32)

    schedule = tuple(jnp.asarray(a) for a in build_schedule(transitions, T))

    out_pallas = jax.block_until_ready(tree_lstm_forward_pallas(x, schedule, params))
    out_ref = jax.block_until_ready(tree_lstm_forward_reference(x, transitions, params))

    assert out_pallas.shape == (B, H), out_pallas.shape
    np.testing.assert_allclose(np.asarray(out_pallas), np.asarray(out_ref),
                               rtol=1e-3, atol=1e-3)
    print("KERNEL_OK")
</pallas_src>

<mosaic_0001>
module attributes {stable_mosaic.version = 11 : i64} {
  func.func @_tree_lstm_kernel(%arg0: memref<15x2x1xi32, #tpu.memory_space<vmem>>, %arg1: memref<15x2x1xi32, #tpu.memory_space<vmem>>, %arg2: memref<15x2x1xi32, #tpu.memory_space<vmem>>, %arg3: memref<2x1xi32, #tpu.memory_space<vmem>>, %arg4: memref<15xi32, #tpu.memory_space<smem>>, %arg5: memref<16x16xf32, #tpu.memory_space<vmem>>, %arg6: memref<16x32xf32, #tpu.memory_space<vmem>>, %arg7: memref<1x32xf32, #tpu.memory_space<vmem>>, %arg8: memref<16x32xf32, #tpu.memory_space<vmem>>, %arg9: memref<1x32xf32, #tpu.memory_space<vmem>>, %arg10: memref<32x160xf32, #tpu.memory_space<vmem>>, %arg11: memref<32x160xf32, #tpu.memory_space<vmem>>, %arg12: memref<1x160xf32, #tpu.memory_space<vmem>>, %arg13: memref<2x32xf32, #tpu.memory_space<vmem>>, %arg14: memref<8x2x32xf32, #tpu.memory_space<vmem>>, %arg15: memref<8x2x32xf32, #tpu.memory_space<vmem>>, %arg16: memref<8x2x32xf32, #tpu.memory_space<vmem>>, %arg17: memref<8x2x32xf32, #tpu.memory_space<vmem>>) attributes {dimension_semantics = [], scalar_prefetch = 0 : i64, scratch_operands = 4 : i64, tpu.core_type = #tpu.core_type<tc>} {
    %cst = arith.constant 0.000000e+00 : f32
    %0 = vector.broadcast %cst : f32 to vector<8x2x32xf32>
    %c0 = arith.constant 0 : index
    %c0_0 = arith.constant 0 : index
    %c0_1 = arith.constant 0 : index
    %1 = vector.load %arg16[%c0, %c0_0, %c0_1] : memref<8x2x32xf32, #tpu.memory_space<vmem>>, vector<8x2x32xf32>
    tpu.vector_store %arg16[%c0, %c0_0, %c0_1], %0 {strides = array<i32>} : memref<8x2x32xf32, #tpu.memory_space<vmem>>, vector<8x2x32xf32>,
    %cst_2 = arith.constant 0.000000e+00 : f32
    %2 = vector.broadcast %cst_2 : f32 to vector<8x2x32xf32>
    %c0_3 = arith.constant 0 : index
    %c0_4 = arith.constant 0 : index
    %c0_5 = arith.constant 0 : index
    %3 = vector.load %arg17[%c0_3, %c0_4, %c0_5] : memref<8x2x32xf32, #tpu.memory_space<vmem>>, vector<8x2x32xf32>
    tpu.vector_store %arg17[%c0_3, %c0_4, %c0_5], %2 {strides = array<i32>} : memref<8x2x32xf32, #tpu.memory_space<vmem>>, vector<8x2x32xf32>,
    %c0_6 = arith.constant 0 : index
    %c0_7 = arith.constant 0 : index
    %4 = vector.load %arg5[%c0_6, %c0_7] : memref<16x16xf32, #tpu.memory_space<vmem>>, vector<16x16xf32>
    %c0_8 = arith.constant 0 : index
    %c0_9 = arith.constant 0 : index
    %5 = vector.load %arg6[%c0_8, %c0_9] : memref<16x32xf32, #tpu.memory_space<vmem>>, vector<16x32xf32>
    %cst_10 = arith.constant dense<0.000000e+00> : vector<16x32xf32>
    %6 = tpu.matmul %4, %5, %cst_10 {dimension_numbers = #tpu.dot_dimension_numbers<[1], [0], [0], [1], [0, 0, 1, 1], [], []>} : vector<16x16xf32>, vector<16x32xf32>, vector<16x32xf32> -> vector<16x32xf32>
    %c0_11 = arith.constant 0 : index
    %c0_12 = arith.constant 0 : index
    %7 = vector.load %arg7[%c0_11, %c0_12] : memref<1x32xf32, #tpu.memory_space<vmem>>, vector<1x32xf32>
    %8 = vector.broadcast %7 : vector<1x32xf32> to vector<16x32xf32>
    %9 = arith.addf %6, %8 : vector<16x32xf32>
    %c0_13 = arith.constant 0 : index
    %c0_14 = arith.constant 0 : index
    %10 = vector.load %arg8[%c0_13, %c0_14] : memref<16x32xf32, #tpu.memory_space<vmem>>, vector<16x32xf32>
    %cst_15 = arith.constant dense<0.000000e+00> : vector<16x32xf32>
    %11 = tpu.matmul %4, %10, %cst_15 {dimension_numbers = #tpu.dot_dimension_numbers<[1], [0], [0], [1], [0, 0, 1, 1], [], []>} : vector<16x16xf32>, vector<16x32xf32>, vector<16x32xf32> -> vector<16x32xf32>
    %c0_16 = arith.constant 0 : index
    %c0_17 = arith.constant 0 : index
    %12 = vector.load %arg9[%c0_16, %c0_17] : memref<1x32xf32, #tpu.memory_space<vmem>>, vector<1x32xf32>
    %13 = vector.broadcast %12 : vector<1x32xf32> to vector<16x32xf32>
    %14 = arith.addf %11, %13 : vector<16x32xf32>
    %15 = arith.negf %14 : vector<16x32xf32>
    %16 = math.exp %15 : vector<16x32xf32>
    %cst_18 = arith.constant 1.000000e+00 : f32
    %17 = vector.broadcast %cst_18 : f32 to vector<16x32xf32>
    %18 = arith.addf %17, %16 : vector<16x32xf32>
    %19 = arith.divf %17, %18 : vector<16x32xf32>
    %20 = math.tanh %9 : vector<16x32xf32>
    %21 = arith.mulf %19, %20 : vector<16x32xf32>
    %22 = vector.extract_strided_slice %9 {offsets = [0, 0], sizes = [2, 32], strides = [1, 1]} : vector<16x32xf32> to vector<2x32xf32>
    %c0_19 = arith.constant 0 : index
    %c0_20 = arith.constant 0 : index
    %c0_21 = arith.constant 0 : index
    %23 = vector.load %arg15[%c0_19, %c0_20, %c0_21] : memref<8x2x32xf32, #tpu.memory_space<vmem>>, vector<1x2x32xf32>
    %24 = vector.shape_cast %23 : vector<1x2x32xf32> to vector<2x32xf32>
    %25 = vector.shape_cast %22 : vector<2x32xf32> to vector<1x2x32xf32>
    tpu.vector_store %arg15[%c0_19, %c0_20, %c0_21], %25 {strides = array<i32>} : memref<8x2x32xf32, #tpu.memory_space<vmem>>, vector<1x2x32xf32>,
    %26 = vector.extract_strided_slice %21 {offsets = [0, 0], sizes = [2, 32], strides = [1, 1]} : vector<16x32xf32> to vector<2x32xf32>
    %c0_22 = arith.constant 0 : index
    %c0_23 = arith.constant 0 : index
    %c0_24 = arith.constant 0 : index
    %27 = vector.load %arg14[%c0_22, %c0_23, %c0_24] : memref<8x2x32xf32, #tpu.memory_space<vmem>>, vector<1x2x32xf32>
    %28 = vector.shape_cast %27 : vector<1x2x32xf32> to vector<2x32xf32>
    %29 = vector.shape_cast %26 : vector<2x32xf32> to vector<1x2x32xf32>
    tpu.vector_store %arg14[%c0_22, %c0_23, %c0_24], %29 {strides = array<i32>} : memref<8x2x32xf32, #tpu.memory_space<vmem>>, vector<1x2x32xf32>,
    %30 = vector.extract_strided_slice %9 {offsets = [2, 0], sizes = [2, 32], strides = [1, 1]} : vector<16x32xf32> to vector<2x32xf32>
    %c1 = arith.constant 1 : index
    %c0_25 = arith.constant 0 : index
    %c0_26 = arith.constant 0 : index
    %31 = vector.load %arg15[%c1, %c0_25, %c0_26] : memref<8x2x32xf32, #tpu.memory_space<vmem>>, vector<1x2x32xf32>
    %32 = vector.shape_cast %31 : vector<1x2x32xf32> to vector<2x32xf32>
    %33 = vector.shape_cast %30 : vector<2x32xf32> to vector<1x2x32xf32>
    tpu.vector_store %arg15[%c1, %c0_25, %c0_26], %33 {strides = array<i32>} : memref<8x2x32xf32, #tpu.memory_space<vmem>>, vector<1x2x32xf32>,
    %34 = vector.extract_strided_slice %21 {offsets = [2, 0], sizes = [2, 32], strides = [1, 1]} : vector<16x32xf32> to vector<2x32xf32>
    %c1_27 = arith.constant 1 : index
    %c0_28 = arith.constant 0 : index
    %c0_29 = arith.constant 0 : index
    %35 = vector.load %arg14[%c1_27, %c0_28, %c0_29] : memref<8x2x32xf32, #tpu.memory_space<vmem>>, vector<1x2x32xf32>
    %36 = vector.shape_cast %35 : vector<1x2x32xf32> to vector<2x32xf32>
    %37 = vector.shape_cast %34 : vector<2x32xf32> to vector<1x2x32xf32>
    tpu.vector_store %arg14[%c1_27, %c0_28, %c0_29], %37 {strides = array<i32>} : memref<8x2x32xf32, #tpu.memory_space<vmem>>, vector<1x2x32xf32>,
    %38 = vector.extract_strided_slice %9 {offsets = [4, 0], sizes = [2, 32], strides = [1, 1]} : vector<16x32xf32> to vector<2x32xf32>
    %c2 = arith.constant 2 : index
    %c0_30 = arith.constant 0 : index
    %c0_31 = arith.constant 0 : index
    %39 = vector.load %arg15[%c2, %c0_30, %c0_31] : memref<8x2x32xf32, #tpu.memory_space<vmem>>, vector<1x2x32xf32>
    %40 = vector.shape_cast %39 : vector<1x2x32xf32> to vector<2x32xf32>
    %41 = vector.shape_cast %38 : vector<2x32xf32> to vector<1x2x32xf32>
    tpu.vector_store %arg15[%c2, %c0_30, %c0_31], %41 {strides = array<i32>} : memref<8x2x32xf32, #tpu.memory_space<vmem>>, vector<1x2x32xf32>,
    %42 = vector.extract_strided_slice %21 {offsets = [4, 0], sizes = [2, 32], strides = [1, 1]} : vector<16x32xf32> to vector<2x32xf32>
    %c2_32 = arith.constant 2 : index
    %c0_33 = arith.constant 0 : index
    %c0_34 = arith.constant 0 : index
    %43 = vector.load %arg14[%c2_32, %c0_33, %c0_34] : memref<8x2x32xf32, #tpu.memory_space<vmem>>, vector<1x2x32xf32>
    %44 = vector.shape_cast %43 : vector<1x2x32xf32> to vector<2x32xf32>
    %45 = vector.shape_cast %42 : vector<2x32xf32> to vector<1x2x32xf32>
    tpu.vector_store %arg14[%c2_32, %c0_33, %c0_34], %45 {strides = array<i32>} : memref<8x2x32xf32, #tpu.memory_space<vmem>>, vector<1x2x32xf32>,
    %46 = vector.extract_strided_slice %9 {offsets = [6, 0], sizes = [2, 32], strides = [1, 1]} : vector<16x32xf32> to vector<2x32xf32>
    %c3 = arith.constant 3 : index
    %c0_35 = arith.constant 0 : index
    %c0_36 = arith.constant 0 : index
    %47 = vector.load %arg15[%c3, %c0_35, %c0_36] : memref<8x2x32xf32, #tpu.memory_space<vmem>>, vector<1x2x32xf32>
    %48 = vector.shape_cast %47 : vector<1x2x32xf32> to vector<2x32xf32>
    %49 = vector.shape_cast %46 : vector<2x32xf32> to vector<1x2x32xf32>
    tpu.vector_store %arg15[%c3, %c0_35, %c0_36], %49 {strides = array<i32>} : memref<8x2x32xf32, #tpu.memory_space<vmem>>, vector<1x2x32xf32>,
    %50 = vector.extract_strided_slice %21 {offsets = [6, 0], sizes = [2, 32], strides = [1, 1]} : vector<16x32xf32> to vector<2x32xf32>
    %c3_37 = arith.constant 3 : index
    %c0_38 = arith.constant 0 : index
    %c0_39 = arith.constant 0 : index
    %51 = vector.load %arg14[%c3_37, %c0_38, %c0_39] : memref<8x2x32xf32, #tpu.memory_space<vmem>>, vector<1x2x32xf32>
    %52 = vector.shape_cast %51 : vector<1x2x32xf32> to vector<2x32xf32>
    %53 = vector.shape_cast %50 : vector<2x32xf32> to vector<1x2x32xf32>
    tpu.vector_store %arg14[%c3_37, %c0_38, %c0_39], %53 {strides = array<i32>} : memref<8x2x32xf32, #tpu.memory_space<vmem>>, vector<1x2x32xf32>,
    %54 = vector.extract_strided_slice %9 {offsets = [8, 0], sizes = [2, 32], strides = [1, 1]} : vector<16x32xf32> to vector<2x32xf32>
    %c4 = arith.constant 4 : index
    %c0_40 = arith.constant 0 : index
    %c0_41 = arith.constant 0 : index
    %55 = vector.load %arg15[%c4, %c0_40, %c0_41] : memref<8x2x32xf32, #tpu.memory_space<vmem>>, vector<1x2x32xf32>
    %56 = vector.shape_cast %55 : vector<1x2x32xf32> to vector<2x32xf32>
    %57 = vector.shape_cast %54 : vector<2x32xf32> to vector<1x2x32xf32>
    tpu.vector_store %arg15[%c4, %c0_40, %c0_41], %57 {strides = array<i32>} : memref<8x2x32xf32, #tpu.memory_space<vmem>>, vector<1x2x32xf32>,
    %58 = vector.extract_strided_slice %21 {offsets = [8, 0], sizes = [2, 32], strides = [1, 1]} : vector<16x32xf32> to vector<2x32xf32>
    %c4_42 = arith.constant 4 : index
    %c0_43 = arith.constant 0 : index
    %c0_44 = arith.constant 0 : index
    %59 = vector.load %arg14[%c4_42, %c0_43, %c0_44] : memref<8x2x32xf32, #tpu.memory_space<vmem>>, vector<1x2x32xf32>
    %60 = vector.shape_cast %59 : vector<1x2x32xf32> to vector<2x32xf32>
    %61 = vector.shape_cast %58 : vector<2x32xf32> to vector<1x2x32xf32>
    tpu.vector_store %arg14[%c4_42, %c0_43, %c0_44], %61 {strides = array<i32>} : memref<8x2x32xf32, #tpu.memory_space<vmem>>, vector<1x2x32xf32>,
    %62 = vector.extract_strided_slice %9 {offsets = [10, 0], sizes = [2, 32], strides = [1, 1]} : vector<16x32xf32> to vector<2x32xf32>
    %c5 = arith.constant 5 : index
    %c0_45 = arith.constant 0 : index
    %c0_46 = arith.constant 0 : index
    %63 = vector.load %arg15[%c5, %c0_45, %c0_46] : memref<8x2x32xf32, #tpu.memory_space<vmem>>, vector<1x2x32xf32>
    %64 = vector.shape_cast %63 : vector<1x2x32xf32> to vector<2x32xf32>
    %65 = vector.shape_cast %62 : vector<2x32xf32> to vector<1x2x32xf32>
    tpu.vector_store %arg15[%c5, %c0_45, %c0_46], %65 {strides = array<i32>} : memref<8x2x32xf32, #tpu.memory_space<vmem>>, vector<1x2x32xf32>,
    %66 = vector.extract_strided_slice %21 {offsets = [10, 0], sizes = [2, 32], strides = [1, 1]} : vector<16x32xf32> to vector<2x32xf32>
    %c5_47 = arith.constant 5 : index
    %c0_48 = arith.constant 0 : index
    %c0_49 = arith.constant 0 : index
    %67 = vector.load %arg14[%c5_47, %c0_48, %c0_49] : memref<8x2x32xf32, #tpu.memory_space<vmem>>, vector<1x2x32xf32>
    %68 = vector.shape_cast %67 : vector<1x2x32xf32> to vector<2x32xf32>
    %69 = vector.shape_cast %66 : vector<2x32xf32> to vector<1x2x32xf32>
    tpu.vector_store %arg14[%c5_47, %c0_48, %c0_49], %69 {strides = array<i32>} : memref<8x2x32xf32, #tpu.memory_space<vmem>>, vector<1x2x32xf32>,
    %70 = vector.extract_strided_slice %9 {offsets = [12, 0], sizes = [2, 32], strides = [1, 1]} : vector<16x32xf32> to vector<2x32xf32>
    %c6 = arith.constant 6 : index
    %c0_50 = arith.constant 0 : index
    %c0_51 = arith.constant 0 : index
    %71 = vector.load %arg15[%c6, %c0_50, %c0_51] : memref<8x2x32xf32, #tpu.memory_space<vmem>>, vector<1x2x32xf32>
    %72 = vector.shape_cast %71 : vector<1x2x32xf32> to vector<2x32xf32>
    %73 = vector.shape_cast %70 : vector<2x32xf32> to vector<1x2x32xf32>
    tpu.vector_store %arg15[%c6, %c0_50, %c0_51], %73 {strides = array<i32>} : memref<8x2x32xf32, #tpu.memory_space<vmem>>, vector<1x2x32xf32>,
    %74 = vector.extract_strided_slice %21 {offsets = [12, 0], sizes = [2, 32], strides = [1, 1]} : vector<16x32xf32> to vector<2x32xf32>
    %c6_52 = arith.constant 6 : index
    %c0_53 = arith.constant 0 : index
    %c0_54 = arith.constant 0 : index
    %75 = vector.load %arg14[%c6_52, %c0_53, %c0_54] : memref<8x2x32xf32, #tpu.memory_space<vmem>>, vector<1x2x32xf32>
    %76 = vector.shape_cast %75 : vector<1x2x32xf32> to vector<2x32xf32>
    %77 = vector.shape_cast %74 : vector<2x32xf32> to vector<1x2x32xf32>
    tpu.vector_store %arg14[%c6_52, %c0_53, %c0_54], %77 {strides = array<i32>} : memref<8x2x32xf32, #tpu.memory_space<vmem>>, vector<1x2x32xf32>,
    %78 = vector.extract_strided_slice %9 {offsets = [14, 0], sizes = [2, 32], strides = [1, 1]} : vector<16x32xf32> to vector<2x32xf32>
    %c7 = arith.constant 7 : index
    %c0_55 = arith.constant 0 : index
    %c0_56 = arith.constant 0 : index
    %79 = vector.load %arg15[%c7, %c0_55, %c0_56] : memref<8x2x32xf32, #tpu.memory_space<vmem>>, vector<1x2x32xf32>
    %80 = vector.shape_cast %79 : vector<1x2x32xf32> to vector<2x32xf32>
    %81 = vector.shape_cast %78 : vector<2x32xf32> to vector<1x2x32xf32>
    tpu.vector_store %arg15[%c7, %c0_55, %c0_56], %81 {strides = array<i32>} : memref<8x2x32xf32, #tpu.memory_space<vmem>>, vector<1x2x32xf32>,
    %82 = vector.extract_strided_slice %21 {offsets = [14, 0], sizes = [2, 32], strides = [1, 1]} : vector<16x32xf32> to vector<2x32xf32>
    %c7_57 = arith.constant 7 : index
    %c0_58 = arith.constant 0 : index
    %c0_59 = arith.constant 0 : index
    %83 = vector.load %arg14[%c7_57, %c0_58, %c0_59] : memref<8x2x32xf32, #tpu.memory_space<vmem>>, vector<1x2x32xf32>
    %84 = vector.shape_cast %83 : vector<1x2x32xf32> to vector<2x32xf32>
    %85 = vector.shape_cast %82 : vector<2x32xf32> to vector<1x2x32xf32>
    tpu.vector_store %arg14[%c7_57, %c0_58, %c0_59], %85 {strides = array<i32>} : memref<8x2x32xf32, #tpu.memory_space<vmem>>, vector<1x2x32xf32>,
    %86 = tpu.iota {dimensions = array<i32: 0>} : vector<8x2x1xi32>
    %c0_i32 = arith.constant 0 : i32
    %c15_i32 = arith.constant 15 : i32
    %87 = arith.addi %c0_i32, %c15_i32 : i32
    %c1_i32 = arith.constant 1 : i32
    scf.for %arg18 = %c0_i32 to %87 step %c1_i32  : i32 {
      %c1_i32_70 = arith.constant 1 : i32
      %99 = arith.muli %arg18, %c1_i32_70 : i32
      %c0_i32_71 = arith.constant 0 : i32
      %100 = arith.addi %c0_i32_71, %99 : i32
      %101 = arith.index_cast %100 : i32 to index
      %c0_72 = arith.constant 0 : index
      %c0_73 = arith.constant 0 : index
      %102 = vector.load %arg0[%101, %c0_72, %c0_73] : memref<15x2x1xi32, #tpu.memory_space<vmem>>, vector<1x2x1xi32>
      %103 = vector.shape_cast %102 : vector<1x2x1xi32> to vector<2x1xi32>
      %104 = arith.index_cast %100 : i32 to index
      %c0_74 = arith.constant 0 : index
      %c0_75 = arith.constant 0 : index
      %105 = vector.load %arg1[%104, %c0_74, %c0_75] : memref<15x2x1xi32, #tpu.memory_space<vmem>>, vector<1x2x1xi32>
      %106 = vector.shape_cast %105 : vector<1x2x1xi32> to vector<2x1xi32>
      %107 = arith.index_cast %100 : i32 to index
      %c0_76 = arith.constant 0 : index
      %c0_77 = arith.constant 0 : index
      %108 = vector.load %arg2[%107, %c0_76, %c0_77] : memref<15x2x1xi32, #tpu.memory_space<vmem>>, vector<1x2x1xi32>
      %109 = vector.shape_cast %108 : vector<1x2x1xi32> to vector<2x1xi32>
      %110 = vector.shape_cast %109 : vector<2x1xi32> to vector<1x2x1xi32>
      %c0_i32_78 = arith.constant 0 : i32
      %111 = vector.broadcast %c0_i32_78 : i32 to vector<2x1xi32>
      %112 = arith.cmpi eq, %103, %111 : vector<2x1xi32>
      %113 = vector.shape_cast %112 : vector<2x1xi1> to vector<1x2x1xi1>
      %c1_i32_79 = arith.constant 1 : i32
      %114 = vector.broadcast %c1_i32_79 : i32 to vector<2x1xi32>
      %115 = arith.cmpi eq, %103, %114 : vector<2x1xi32>
      %116 = vector.shape_cast %115 : vector<2x1xi1> to vector<1x2x1xi1>
      %117 = vector.broadcast %110 : vector<1x2x1xi32> to vector<8x2x1xi32>
      %118 = arith.cmpi eq, %86, %117 : vector<8x2x1xi32>
      %119 = vector.shape_cast %106 : vector<2x1xi32> to vector<1x2x1xi32>
      %120 = vector.broadcast %119 : vector<1x2x1xi32> to vector<8x2x1xi32>
      %121 = arith.cmpi eq, %86, %120 : vector<8x2x1xi32>
      %c0_80 = arith.constant 0 : index
      %c0_81 = arith.constant 0 : index
      %c0_82 = arith.constant 0 : index
      %122 = vector.load %arg14[%c0_80, %c0_81, %c0_82] : memref<8x2x32xf32, #tpu.memory_space<vmem>>, vector<8x2x32xf32>
      %c0_83 = arith.constant 0 : index
      %c0_84 = arith.constant 0 : index
      %c0_85 = arith.constant 0 : index
      %123 = vector.load %arg15[%c0_83, %c0_84, %c0_85] : memref<8x2x32xf32, #tpu.memory_space<vmem>>, vector<8x2x32xf32>
      %cst_86 = arith.constant 0.000000e+00 : f32
      %124 = vector.shape_cast %121 : vector<8x2x1xi1> to vector<8x2x1xi1>
      %125 = vector.broadcast %124 : vector<8x2x1xi1> to vector<8x2x32xi1>
      %126 = vector.broadcast %cst_86 : f32 to vector<8x2x32xf32>
      %127 = arith.select %125, %122, %126 : vector<8x2x32xi1>, vector<8x2x32xf32>
      %cst_87 = arith.constant dense<0.000000e+00> : vector<2x32xf32>
      %128 = vector.multi_reduction <add>, %127, %cst_87 [0] : vector<8x2x32xf32> to vector<2x32xf32>
      %cst_88 = arith.constant 0.000000e+00 : f32
      %129 = vector.shape_cast %121 : vector<8x2x1xi1> to vector<8x2x1xi1>
      %130 = vector.broadcast %129 : vector<8x2x1xi1> to vector<8x2x32xi1>
      %131 = vector.broadcast %cst_88 : f32 to vector<8x2x32xf32>
      %132 = arith.select %130, %123, %131 : vector<8x2x32xi1>, vector<8x2x32xf32>
      %cst_89 = arith.constant dense<0.000000e+00> : vector<2x32xf32>
      %133 = vector.multi_reduction <add>, %132, %cst_89 [0] : vector<8x2x32xf32> to vector<2x32xf32>
      %134 = vector.broadcast %113 : vector<1x2x1xi1> to vector<8x2x1xi1>
      %135 = arith.andi %118, %134 : vector<8x2x1xi1>
      %136 = vector.shape_cast %128 : vector<2x32xf32> to vector<1x2x32xf32>
      %c0_90 = arith.constant 0 : index
      %c0_91 = arith.constant 0 : index
      %c0_92 = arith.constant 0 : index
      %137 = vector.load %arg16[%c0_90, %c0_91, %c0_92] : memref<8x2x32xf32, #tpu.memory_space<vmem>>, vector<8x2x32xf32>
      %138 = vector.shape_cast %135 : vector<8x2x1xi1> to vector<8x2x1xi1>
      %139 = vector.broadcast %138 : vector<8x2x1xi1> to vector<8x2x32xi1>
      %140 = vector.shape_cast %136 : vector<1x2x32xf32> to vector<1x2x32xf32>
      %141 = vector.broadcast %140 : vector<1x2x32xf32> to vector<8x2x32xf32>
      %142 = arith.select %139, %141, %137 : vector<8x2x32xi1>, vector<8x2x32xf32>
      %c0_93 = arith.constant 0 : index
      %c0_94 = arith.constant 0 : index
      %c0_95 = arith.constant 0 : index
      %143 = vector.load %arg16[%c0_93, %c0_94, %c0_95] : memref<8x2x32xf32, #tpu.memory_space<vmem>>, vector<8x2x32xf32>
      tpu.vector_store %arg16[%c0_93, %c0_94, %c0_95], %142 {strides = array<i32>} : memref<8x2x32xf32, #tpu.memory_space<vmem>>, vector<8x2x32xf32>,
      %144 = vector.shape_cast %133 : vector<2x32xf32> to vector<1x2x32xf32>
      %c0_96 = arith.constant 0 : index
      %c0_97 = arith.constant 0 : index
      %c0_98 = arith.constant 0 : index
      %145 = vector.load %arg17[%c0_96, %c0_97, %c0_98] : memref<8x2x32xf32, #tpu.memory_space<vmem>>, vector<8x2x32xf32>
      %146 = vector.shape_cast %135 : vector<8x2x1xi1> to vector<8x2x1xi1>
      %147 = vector.broadcast %146 : vector<8x2x1xi1> to vector<8x2x32xi1>
      %148 = vector.shape_cast %144 : vector<1x2x32xf32> to vector<1x2x32xf32>
      %149 = vector.broadcast %148 : vector<1x2x32xf32> to vector<8x2x32xf32>
      %150 = arith.select %147, %149, %145 : vector<8x2x32xi1>, vector<8x2x32xf32>
      %c0_99 = arith.constant 0 : index
      %c0_100 = arith.constant 0 : index
      %c0_101 = arith.constant 0 : index
      %151 = vector.load %arg17[%c0_99, %c0_100, %c0_101] : memref<8x2x32xf32, #tpu.memory_space<vmem>>, vector<8x2x32xf32>
      tpu.vector_store %arg17[%c0_99, %c0_100, %c0_101], %150 {strides = array<i32>} : memref<8x2x32xf32, #tpu.memory_space<vmem>>, vector<8x2x32xf32>,
      %152 = arith.index_cast %100 : i32 to index
      %153 = memref.load %arg4[%152] : memref<15xi32, #tpu.memory_space<smem>>
      %c0_i32_102 = arith.constant 0 : i32
      %154 = arith.cmpi sgt, %153, %c0_i32_102 : i32
      %155 = arith.extui %154 : i1 to i32
      %c0_i32_103 = arith.constant 0 : i32
      %156 = arith.cmpi ne, %155, %c0_i32_103 : i32
      scf.if %156 {
        %c1_i32_104 = arith.constant 1 : i32
        %157 = vector.broadcast %c1_i32_104 : i32 to vector<1x2x1xi32>
        %158 = arith.addi %110, %157 : vector<1x2x1xi32>
        %159 = vector.broadcast %158 : vector<1x2x1xi32> to vector<8x2x1xi32>
        %160 = arith.cmpi eq, %86, %159 : vector<8x2x1xi32>
        %c0_105 = arith.constant 0 : index
        %c0_106 = arith.constant 0 : index
        %c0_107 = arith.constant 0 : index
        %161 = vector.load %arg16[%c0_105, %c0_106, %c0_107] : memref<8x2x32xf32, #tpu.memory_space<vmem>>, vector<8x2x32xf32>
        %c0_108 = arith.constant 0 : index
        %c0_109 = arith.constant 0 : index
        %c0_110 = arith.constant 0 : index
        %162 = vector.load %arg17[%c0_108, %c0_109, %c0_110] : memref<8x2x32xf32, #tpu.memory_space<vmem>>, vector<8x2x32xf32>
        %cst_111 = arith.constant 0.000000e+00 : f32
        %163 = vector.shape_cast %118 : vector<8x2x1xi1> to vector<8x2x1xi1>
        %164 = vector.broadcast %163 : vector<8x2x1xi1> to vector<8x2x32xi1>
        %165 = vector.broadcast %cst_111 : f32 to vector<8x2x32xf32>
        %166 = arith.select %164, %161, %165 : vector<8x2x32xi1>, vector<8x2x32xf32>
        %cst_112 = arith.constant dense<0.000000e+00> : vector<2x32xf32>
        %167 = vector.multi_reduction <add>, %166, %cst_112 [0] : vector<8x2x32xf32> to vector<2x32xf32>
        %cst_113 = arith.constant 0.000000e+00 : f32
        %168 = vector.shape_cast %118 : vector<8x2x1xi1> to vector<8x2x1xi1>
        %169 = vector.broadcast %168 : vector<8x2x1xi1> to vector<8x2x32xi1>
        %170 = vector.broadcast %cst_113 : f32 to vector<8x2x32xf32>
        %171 = arith.select %169, %162, %170 : vector<8x2x32xi1>, vector<8x2x32xf32>
        %cst_114 = arith.constant dense<0.000000e+00> : vector<2x32xf32>
        %172 = vector.multi_reduction <add>, %171, %cst_114 [0] : vector<8x2x32xf32> to vector<2x32xf32>
        %cst_115 = arith.constant 0.000000e+00 : f32
        %173 = vector.shape_cast %160 : vector<8x2x1xi1> to vector<8x2x1xi1>
        %174 = vector.broadcast %173 : vector<8x2x1xi1> to vector<8x2x32xi1>
        %175 = vector.broadcast %cst_115 : f32 to vector<8x2x32xf32>
        %176 = arith.select %174, %161, %175 : vector<8x2x32xi1>, vector<8x2x32xf32>
        %cst_116 = arith.constant dense<0.000000e+00> : vector<2x32xf32>
        %177 = vector.multi_reduction <add>, %176, %cst_116 [0] : vector<8x2x32xf32> to vector<2x32xf32>
        %cst_117 = arith.constant 0.000000e+00 : f32
        %178 = vector.shape_cast %160 : vector<8x2x1xi1> to vector<8x2x1xi1>
        %179 = vector.broadcast %178 : vector<8x2x1xi1> to vector<8x2x32xi1>
        %180 = vector.broadcast %cst_117 : f32 to vector<8x2x32xf32>
        %181 = arith.select %179, %162, %180 : vector<8x2x32xi1>, vector<8x2x32xf32>
        %cst_118 = arith.constant dense<0.000000e+00> : vector<2x32xf32>
        %182 = vector.multi_reduction <add>, %181, %cst_118 [0] : vector<8x2x32xf32> to vector<2x32xf32>
        %c0_119 = arith.constant 0 : index
        %c0_120 = arith.constant 0 : index
        %183 = vector.load %arg10[%c0_119, %c0_120] : memref<32x160xf32, #tpu.memory_space<vmem>>, vector<32x160xf32>
        %cst_121 = arith.constant dense<0.000000e+00> : vector<2x160xf32>
        %184 = tpu.matmul %167, %183, %cst_121 {dimension_numbers = #tpu.dot_dimension_numbers<[1], [0], [0], [1], [0, 0, 1, 1], [], []>} : vector<2x32xf32>, vector<32x160xf32>, vector<2x160xf32> -> vector<2x160xf32>
        %c0_122 = arith.constant 0 : index
        %c0_123 = arith.constant 0 : index
        %185 = vector.load %arg11[%c0_122, %c0_123] : memref<32x160xf32, #tpu.memory_space<vmem>>, vector<32x160xf32>
        %cst_124 = arith.constant dense<0.000000e+00> : vector<2x160xf32>
        %186 = tpu.matmul %177, %185, %cst_124 {dimension_numbers = #tpu.dot_dimension_numbers<[1], [0], [0], [1], [0, 0, 1, 1], [], []>} : vector<2x32xf32>, vector<32x160xf32>, vector<2x160xf32> -> vector<2x160xf32>
        %187 = arith.addf %184, %186 : vector<2x160xf32>
        %c0_125 = arith.constant 0 : index
        %c0_126 = arith.constant 0 : index
        %188 = vector.load %arg12[%c0_125, %c0_126] : memref<1x160xf32, #tpu.memory_space<vmem>>, vector<1x160xf32>
        %189 = vector.broadcast %188 : vector<1x160xf32> to vector<2x160xf32>
        %190 = arith.addf %187, %189 : vector<2x160xf32>
        %191 = vector.extract_strided_slice %190 {offsets = [0, 0], sizes = [2, 32], strides = [1, 1]} : vector<2x160xf32> to vector<2x32xf32>
        %192 = arith.negf %191 : vector<2x32xf32>
        %193 = math.exp %192 : vector<2x32xf32>
        %cst_127 = arith.constant 1.000000e+00 : f32
        %194 = vector.broadcast %cst_127 : f32 to vector<2x32xf32>
        %195 = arith.addf %194, %193 : vector<2x32xf32>
        %196 = arith.divf %194, %195 : vector<2x32xf32>
        %197 = vector.extract_strided_slice %190 {offsets = [0, 32], sizes = [2, 32], strides = [1, 1]} : vector<2x160xf32> to vector<2x32xf32>
        %198 = arith.negf %197 : vector<2x32xf32>
        %199 = math.exp %198 : vector<2x32xf32>
        %cst_128 = arith.constant 1.000000e+00 : f32
        %200 = vector.broadcast %cst_128 : f32 to vector<2x32xf32>
        %201 = arith.addf %200, %199 : vector<2x32xf32>
        %202 = arith.divf %200, %201 : vector<2x32xf32>
        %203 = vector.extract_strided_slice %190 {offsets = [0, 64], sizes = [2, 32], strides = [1, 1]} : vector<2x160xf32> to vector<2x32xf32>
        %204 = arith.negf %203 : vector<2x32xf32>
        %205 = math.exp %204 : vector<2x32xf32>
        %cst_129 = arith.constant 1.000000e+00 : f32
        %206 = vector.broadcast %cst_129 : f32 to vector<2x32xf32>
        %207 = arith.addf %206, %205 : vector<2x32xf32>
        %208 = arith.divf %206, %207 : vector<2x32xf32>
        %209 = vector.extract_strided_slice %190 {offsets = [0, 96], sizes = [2, 32], strides = [1, 1]} : vector<2x160xf32> to vector<2x32xf32>
        %210 = math.tanh %209 : vector<2x32xf32>
        %211 = vector.extract_strided_slice %190 {offsets = [0, 128], sizes = [2, 32], strides = [1, 1]} : vector<2x160xf32> to vector<2x32xf32>
        %212 = arith.negf %211 : vector<2x32xf32>
        %213 = math.exp %212 : vector<2x32xf32>
        %cst_130 = arith.constant 1.000000e+00 : f32
        %214 = vector.broadcast %cst_130 : f32 to vector<2x32xf32>
        %215 = arith.addf %214, %213 : vector<2x32xf32>
        %216 = arith.divf %214, %215 : vector<2x32xf32>
        %217 = arith.mulf %202, %172 : vector<2x32xf32>
        %218 = arith.mulf %208, %182 : vector<2x32xf32>
        %219 = arith.addf %217, %218 : vector<2x32xf32>
        %220 = arith.mulf %196, %210 : vector<2x32xf32>
        %221 = arith.addf %219, %220 : vector<2x32xf32>
        %222 = math.tanh %221 : vector<2x32xf32>
        %223 = arith.mulf %216, %222 : vector<2x32xf32>
        %224 = vector.broadcast %116 : vector<1x2x1xi1> to vector<8x2x1xi1>
        %225 = arith.andi %118, %224 : vector<8x2x1xi1>
        %226 = vector.shape_cast %223 : vector<2x32xf32> to vector<1x2x32xf32>
        %c0_131 = arith.constant 0 : index
        %c0_132 = arith.constant 0 : index
        %c0_133 = arith.constant 0 : index
        %227 = vector.load %arg16[%c0_131, %c0_132, %c0_133] : memref<8x2x32xf32, #tpu.memory_space<vmem>>, vector<8x2x32xf32>
        %228 = vector.shape_cast %225 : vector<8x2x1xi1> to vector<8x2x1xi1>
        %229 = vector.broadcast %228 : vector<8x2x1xi1> to vector<8x2x32xi1>
        %230 = vector.shape_cast %226 : vector<1x2x32xf32> to vector<1x2x32xf32>
        %231 = vector.broadcast %230 : vector<1x2x32xf32> to vector<8x2x32xf32>
        %232 = arith.select %229, %231, %227 : vector<8x2x32xi1>, vector<8x2x32xf32>
        %c0_134 = arith.constant 0 : index
        %c0_135 = arith.constant 0 : index
        %c0_136 = arith.constant 0 : index
        %233 = vector.load %arg16[%c0_134, %c0_135, %c0_136] : memref<8x2x32xf32, #tpu.memory_space<vmem>>, vector<8x2x32xf32>
        tpu.vector_store %arg16[%c0_134, %c0_135, %c0_136], %232 {strides = array<i32>} : memref<8x2x32xf32, #tpu.memory_space<vmem>>, vector<8x2x32xf32>,
        %234 = vector.shape_cast %221 : vector<2x32xf32> to vector<1x2x32xf32>
        %c0_137 = arith.constant 0 : index
        %c0_138 = arith.constant 0 : index
        %c0_139 = arith.constant 0 : index
        %235 = vector.load %arg17[%c0_137, %c0_138, %c0_139] : memref<8x2x32xf32, #tpu.memory_space<vmem>>, vector<8x2x32xf32>
        %236 = vector.shape_cast %225 : vector<8x2x1xi1> to vector<8x2x1xi1>
        %237 = vector.broadcast %236 : vector<8x2x1xi1> to vector<8x2x32xi1>
        %238 = vector.shape_cast %234 : vector<1x2x32xf32> to vector<1x2x32xf32>
        %239 = vector.broadcast %238 : vector<1x2x32xf32> to vector<8x2x32xf32>
        %240 = arith.select %237, %239, %235 : vector<8x2x32xi1>, vector<8x2x32xf32>
        %c0_140 = arith.constant 0 : index
        %c0_141 = arith.constant 0 : index
        %c0_142 = arith.constant 0 : index
        %241 = vector.load %arg17[%c0_140, %c0_141, %c0_142] : memref<8x2x32xf32, #tpu.memory_space<vmem>>, vector<8x2x32xf32>
        tpu.vector_store %arg17[%c0_140, %c0_141, %c0_142], %240 {strides = array<i32>} : memref<8x2x32xf32, #tpu.memory_space<vmem>>, vector<8x2x32xf32>,
      } else {
      }
    }
    %c15_i32_60 = arith.constant 15 : i32
    %c0_61 = arith.constant 0 : index
    %c0_62 = arith.constant 0 : index
    %88 = vector.load %arg3[%c0_61, %c0_62] : memref<2x1xi32, #tpu.memory_space<vmem>>, vector<2x1xi32>
    %89 = vector.shape_cast %88 : vector<2x1xi32> to vector<1x2x1xi32>
    %90 = vector.broadcast %89 : vector<1x2x1xi32> to vector<8x2x1xi32>
    %91 = arith.cmpi eq, %86, %90 : vector<8x2x1xi32>
    %c0_63 = arith.constant 0 : index
    %c0_64 = arith.constant 0 : index
    %c0_65 = arith.constant 0 : index
    %92 = vector.load %arg16[%c0_63, %c0_64, %c0_65] : memref<8x2x32xf32, #tpu.memory_space<vmem>>, vector<8x2x32xf32>
    %cst_66 = arith.constant 0.000000e+00 : f32
    %93 = vector.shape_cast %91 : vector<8x2x1xi1> to vector<8x2x1xi1>
    %94 = vector.broadcast %93 : vector<8x2x1xi1> to vector<8x2x32xi1>
    %95 = vector.broadcast %cst_66 : f32 to vector<8x2x32xf32>
    %96 = arith.select %94, %92, %95 : vector<8x2x32xi1>, vector<8x2x32xf32>
    %cst_67 = arith.constant dense<0.000000e+00> : vector<2x32xf32>
    %97 = vector.multi_reduction <add>, %96, %cst_67 [0] : vector<8x2x32xf32> to vector<2x32xf32>
    %c0_68 = arith.constant 0 : index
    %c0_69 = arith.constant 0 : index
    %98 = vector.load %arg13[%c0_68, %c0_69] : memref<2x32xf32, #tpu.memory_space<vmem>>, vector<2x32xf32>
    tpu.vector_store %arg13[%c0_68, %c0_69], %97 {strides = array<i32>} : memref<2x32xf32, #tpu.memory_space<vmem>>, vector<2x32xf32>,
    return
  }
}

</mosaic_0001>

<llo_original>
// kernel: tree_lstm_forward_pallas.1
$region0: #{tree_lstm_forward_pallas.1}
  #allocation0 [shape = 'u32[]', space=smem, size = 0x4, offset = 0x4, fixed_abs, tag = 'smem constant byte address 0x4 - core index']
  #allocation1 [shape = 'u32[144,128]{1,0:T(1,128)}', space=vmem, size = 0x12000, scoped, tag = 'internal scratch']
  #allocation2 [shape = 'f32[8,2,32]{2,1,0:T(2,128)}', space=vmem, size = 0x2000, scoped, tag = 'scratch operand']
  #allocation3 [shape = 'f32[8,2,32]{2,1,0:T(2,128)}', space=vmem, size = 0x2000, scoped, tag = 'scratch operand']
  #allocation4 [shape = 'f32[8,2,32]{2,1,0:T(2,128)}', space=vmem, size = 0x2000, scoped, tag = 'scratch operand']
  #allocation5 [shape = 'f32[8,2,32]{2,1,0:T(2,128)}', space=vmem, size = 0x2000, scoped, tag = 'scratch operand']
  %s0 = inlined_call_operand.vmem [shape: s32[15,2,1], index: 0, kind: input, shape index: {}]
  %s1 = inlined_call_operand.vmem [shape: s32[15,2,1], index: 1, kind: input, shape index: {}]
  %s2 = inlined_call_operand.vmem [shape: s32[15,2,1], index: 2, kind: input, shape index: {}]
  %s3 = inlined_call_operand.vmem [shape: s32[2,1], index: 3, kind: input, shape index: {}]
  %s4 = inlined_call_operand.vmem [shape: s32[15], index: 4, kind: input, shape index: {}]
  %s5 = inlined_call_operand.vmem [shape: f32[16,16], index: 5, kind: input, shape index: {}]
  %s6 = inlined_call_operand.vmem [shape: f32[16,32], index: 6, kind: input, shape index: {}]
  %s7 = inlined_call_operand.vmem [shape: f32[1,32], index: 7, kind: input, shape index: {}]
  %s8 = inlined_call_operand.vmem [shape: f32[16,32], index: 8, kind: input, shape index: {}]
  %s9 = inlined_call_operand.vmem [shape: f32[1,32], index: 9, kind: input, shape index: {}]
  %s10 = inlined_call_operand.vmem [shape: f32[32,160], index: 10, kind: input, shape index: {}]
  %s11 = inlined_call_operand.vmem [shape: f32[32,160], index: 11, kind: input, shape index: {}]
  %s12 = inlined_call_operand.vmem [shape: f32[1,160], index: 12, kind: input, shape index: {}]
  %s13 = inlined_call_operand.hbm [shape: f32[2,32], index: 13, kind: output, shape index: {}]
  %s14 = sld [smem:[#allocation0]]
  $region77: #{tree_lstm_forward_pallas.1} parent=0
    _
  %s16 = ssub.s32 1, %s14
  %s17 = scalar_select 0, %s16, %s14
  $region1: #{tree_lstm_forward_pallas.1} parent=0
    #allocation6 [shape = 'u8[512]{0}', space=smem, size = 0x200, scoped, tag = 'input window, operand 4, single buffered']
    #allocation7 [shape = 's32[1]{0}', space=sflag, size = 0x4, scoped, tag = 'scoped memory for tree_lstm_forward_pallas.1']
    #allocation8 [shape = 's32[1]{0}', space=sflag, size = 0x4, scoped, tag = 'scoped memory for tree_lstm_forward_pallas.1']
    #allocation9 [shape = 'u8[1024]{0}', space=vmem, size = 0x400, scoped, tag = 'output window, operand 0, single buffered']
    %18 = vsyncpa [#allocation8], 0
    %19 = vsyncpa [#allocation7], 0
    // Predicated region
    $region2: #{tree_lstm_forward_pallas.1} parent=1 // pred_check
      _
    $region3: #{tree_lstm_forward_pallas.1} parent=1 // pred_check_branch
      %21 = sbr.rel (0) target = $region5
    $region4: #{tree_lstm_forward_pallas.1} parent=1 // pred_region
      _
    $region5: #{tree_lstm_forward_pallas.1} parent=1 // pred_fallthru
      _
    // Predicated region
    $region6: #{tree_lstm_forward_pallas.1} parent=1 // pred_check
      _
    $region7: #{tree_lstm_forward_pallas.1} parent=1 // pred_check_branch
      %23 = sbr.rel (0) target = $region9
    $region8: #{tree_lstm_forward_pallas.1} parent=1 // pred_region
      _
    $region9: #{tree_lstm_forward_pallas.1} parent=1 // pred_fallthru
      _
    // Predicated region
    $region10: #{tree_lstm_forward_pallas.1} parent=1 // pred_check
      _
    $region11: #{tree_lstm_forward_pallas.1} parent=1 // pred_check_branch
      %25 = sbr.rel (0) target = $region13
    $region12: #{tree_lstm_forward_pallas.1} parent=1 // pred_region
      _
    $region13: #{tree_lstm_forward_pallas.1} parent=1 // pred_fallthru
      _
    // Predicated region
    $region14: #{tree_lstm_forward_pallas.1} parent=1 // pred_check
      _
    $region15: #{tree_lstm_forward_pallas.1} parent=1 // pred_check_branch
      %27 = sbr.rel (0) target = $region17
    $region16: #{tree_lstm_forward_pallas.1} parent=1 // pred_region
      _
    $region17: #{tree_lstm_forward_pallas.1} parent=1 // pred_fallthru
      _
    // Predicated region
    $region18: #{tree_lstm_forward_pallas.1} parent=1 // pred_check
      _
    $region19: #{tree_lstm_forward_pallas.1} parent=1 // pred_check_branch
      %29 = sbr.rel (0) target = $region21
    $region20: #{tree_lstm_forward_pallas.1} parent=1 // pred_region
      %s31 = ssub.s32 16, 16
      %32 = vsyncadd [#allocation8], %s31
      %s34 = sshll.u32 %s4, 4
      %s35 = int_to_ptr.vmem [resolvable:$true] %s34
      %37 = dma.vmem_to_smem %s35, 16, [#allocation6], [#allocation8]
    $region21: #{tree_lstm_forward_pallas.1} parent=1 // pred_fallthru
      _
    // Predicated region
    $region22: #{tree_lstm_forward_pallas.1} parent=1 // pred_check
      _
    $region23: #{tree_lstm_forward_pallas.1} parent=1 // pred_check_branch
      %39 = sbr.rel (0) target = $region25
    $region24: #{tree_lstm_forward_pallas.1} parent=1 // pred_region
      _
    $region25: #{tree_lstm_forward_pallas.1} parent=1 // pred_fallthru
      _
    // Predicated region
    $region26: #{tree_lstm_forward_pallas.1} parent=1 // pred_check
      _
    $region27: #{tree_lstm_forward_pallas.1} parent=1 // pred_check_branch
      %41 = sbr.rel (0) target = $region29
    $region28: #{tree_lstm_forward_pallas.1} parent=1 // pred_region
      _
    $region29: #{tree_lstm_forward_pallas.1} parent=1 // pred_fallthru
      _
    // Predicated region
    $region30: #{tree_lstm_forward_pallas.1} parent=1 // pred_check
      _
    $region31: #{tree_lstm_forward_pallas.1} parent=1 // pred_check_branch
      %43 = sbr.rel (0) target = $region33
    $region32: #{tree_lstm_forward_pallas.1} parent=1 // pred_region
      _
    $region33: #{tree_lstm_forward_pallas.1} parent=1 // pred_fallthru
      _
    // Predicated region
    $region34: #{tree_lstm_forward_pallas.1} parent=1 // pred_check
      _
    $region35: #{tree_lstm_forward_pallas.1} parent=1 // pred_check_branch
      %45 = sbr.rel (0) target = $region37
    $region36: #{tree_lstm_forward_pallas.1} parent=1 // pred_region
      _
    $region37: #{tree_lstm_forward_pallas.1} parent=1 // pred_fallthru
      _
    // Predicated region
    $region38: #{tree_lstm_forward_pallas.1} parent=1 // pred_check
      _
    $region39: #{tree_lstm_forward_pallas.1} parent=1 // pred_check_branch
      %47 = sbr.rel (0) target = $region41
    $region40: #{tree_lstm_forward_pallas.1} parent=1 // pred_region
      _
    $region41: #{tree_lstm_forward_pallas.1} parent=1 // pred_fallthru
      _
    // Predicated region
    $region42: #{tree_lstm_forward_pallas.1} parent=1 // pred_check
      _
    $region43: #{tree_lstm_forward_pallas.1} parent=1 // pred_check_branch
      %49 = sbr.rel (0) target = $region45
    $region44: #{tree_lstm_forward_pallas.1} parent=1 // pred_region
      _
    $region45: #{tree_lstm_forward_pallas.1} parent=1 // pred_fallthru
      _
    // Predicated region
    $region46: #{tree_lstm_forward_pallas.1} parent=1 // pred_check
      _
    $region47: #{tree_lstm_forward_pallas.1} parent=1 // pred_check_branch
      %51 = sbr.rel (0) target = $region49
    $region48: #{tree_lstm_forward_pallas.1} parent=1 // pred_region
      _
    $region49: #{tree_lstm_forward_pallas.1} parent=1 // pred_fallthru
      _
    // Predicated region
    $region50: #{tree_lstm_forward_pallas.1} parent=1 // pred_check
      _
    $region51: #{tree_lstm_forward_pallas.1} parent=1 // pred_check_branch
      %53 = sbr.rel (0) target = $region53
    $region52: #{tree_lstm_forward_pallas.1} parent=1 // pred_region
      _
    $region53: #{tree_lstm_forward_pallas.1} parent=1 // pred_fallthru
      _
    // Predicated region
    $region54: #{tree_lstm_forward_pallas.1} parent=1 // pred_check
      _
    $region55: #{tree_lstm_forward_pallas.1} parent=1 // pred_check_branch
      %55 = sbr.rel (0) target = $region57
    $region56: #{tree_lstm_forward_pallas.1} parent=1 // pred_region
      %56 = dma.done [#allocation8], 16
    $region57: #{tree_lstm_forward_pallas.1} parent=1 // pred_fallthru
      _
    %57 = sfence
    %vm58 = vcmask 254976
    %59 = vst.msk [vmem:[#allocation4] sm:$0x3] %vm58, 0.0
    %60 = vst.msk [vmem:[#allocation4 + $0x2] sm:$0x3] %vm58, 0.0
    %61 = vst.msk [vmem:[#allocation4 + $0x4] sm:$0x3] %vm58, 0.0
    %62 = vst.msk [vmem:[#allocation4 + $0x6] sm:$0x3] %vm58, 0.0
    %63 = vst.msk [vmem:[#allocation4 + $0x8] sm:$0x3] %vm58, 0.0
    %64 = vst.msk [vmem:[#allocation4 + $0xa] sm:$0x3] %vm58, 0.0
    %65 = vst.msk [vmem:[#allocation4 + $0xc] sm:$0x3] %vm58, 0.0
    %66 = vst.msk [vmem:[#allocation4 + $0xe] sm:$0x3] %vm58, 0.0
    %67 = vst.msk [vmem:[#allocation5] sm:$0x3] %vm58, 0.0
    %68 = vst.msk [vmem:[#allocation5 + $0x2] sm:$0x3] %vm58, 0.0
    %69 = vst.msk [vmem:[#allocation5 + $0x4] sm:$0x3] %vm58, 0.0
    %70 = vst.msk [vmem:[#allocation5 + $0x6] sm:$0x3] %vm58, 0.0
    %71 = vst.msk [vmem:[#allocation5 + $0x8] sm:$0x3] %vm58, 0.0
    %72 = vst.msk [vmem:[#allocation5 + $0xa] sm:$0x3] %vm58, 0.0
    %73 = vst.msk [vmem:[#allocation5 + $0xc] sm:$0x3] %vm58, 0.0
    %74 = vst.msk [vmem:[#allocation5 + $0xe] sm:$0x3] %vm58, 0.0
    %v75 = vld [vmem:[%s5] sm:$0xff]
    %v76 = vld [vmem:[%s5 + $0x8] sm:$0xff]
    %v77 = vld [vmem:[%s6] sm:$0xff]
    %v78 = vld [vmem:[%s6 + $0x8] sm:$0xff]
    %v79 = vld [vmem:[%s7] sm:$0x1]
    %v81 = vlaneseq
    %v82 = vshrl.u32 %v81, 7
    %v83 = vsub.s32 0, %v82
    %v84 = vrot.slane %v79, %v83
    %vm86 = vcmask 130048
    %v88 = vsel %vm86, %v75, 0
    %v91 = vsel %vm86, %v76, 0
    %93 = vmatprep.subr.mxu0 0.0
    %94 = vmatpush1.msra.mxu0 %v77
    %95 = vmatprep.subr.mxu0 0.0
    %96 = vmatpush1.msra.mxu0 %v78
    %97 = vmatprep.subr.mxu0 0.0
    %98 = vmatpush1.msra.mxu0 0.0
    %99 = vmatprep.subr.mxu0 0.0
    %100 = vmatpush1.msra.mxu0 0.0
    %101 = vmatprep.subr.mxu0 0.0
    %102 = vmatpush1.msra.mxu0 0.0
    %103 = vmatprep.subr.mxu0 0.0
    %104 = vmatpush1.msra.mxu0 0.0
    %105 = vmatprep.subr.mxu0 0.0
    %106 = vmatpush1.msra.mxu0 0.0
    %107 = vmatprep.subr.mxu0 0.0
    %108 = vmatpush1.msra.mxu0 0.0
    %109 = vmatprep.subr.mxu0 0.0
    %110 = vmatpush1.msra.mxu0 0.0
    %111 = vmatprep.subr.mxu0 0.0
    %112 = vmatpush1.msra.mxu0 0.0
    %113 = vmatprep.subr.mxu0 0.0
    %114 = vmatpush1.msra.mxu0 0.0
    %115 = vmatprep.subr.mxu0 0.0
    %116 = vmatpush1.msra.mxu0 0.0
    %117 = vmatprep.subr.mxu0 0.0
    %118 = vmatpush1.msra.mxu0 0.0
    %119 = vmatprep.subr.mxu0 0.0
    %120 = vmatpush1.msra.mxu0 0.0
    %121 = vmatprep.subr.mxu0 0.0
    %122 = vmatpush1.msra.mxu0 0.0
    %123 = vmatprep.subr.mxu0 0.0
    %124 = vmatpush1.msra.mxu0 0.0
    %125 = vmatprep.subr.mxu0 0.0
    %126 = vmatpush1.msra.mxu0 0.0
    %127 = vmatprep.subr.mxu0 0.0
    %128 = vmatpush1.msra.mxu0 0.0
    %129 = vmatprep.subr.mxu0 0.0
    %130 = vmatpush1.msra.mxu0 0.0
    %131 = vmatprep.subr.mxu0 0.0
    %132 = vmatpush1.msra.mxu0 0.0
    %133 = vmatprep.subr.mxu0 0.0
    %134 = vmatpush1.msra.mxu0 0.0
    %135 = vmatprep.subr.mxu0 0.0
    %136 = vmatpush1.msra.mxu0 0.0
    %137 = vmatprep.subr.mxu0 0.0
    %138 = vmatpush1.msra.mxu0 0.0
    %139 = vmatprep.subr.mxu0 0.0
    %140 = vmatpush1.msra.mxu0 0.0
    %141 = vmatprep.subr.mxu0 0.0
    %142 = vmatpush1.msra.mxu0 0.0
    %143 = vmatprep.subr.mxu0 0.0
    %144 = vmatpush1.msra.mxu0 0.0
    %145 = vmatprep.subr.mxu0 0.0
    %146 = vmatpush1.msra.mxu0 0.0
    %147 = vmatprep.subr.mxu0 0.0
    %148 = vmatpush1.msra.mxu0 0.0
    %149 = vmatprep.subr.mxu0 0.0
    %150 = vmatpush1.msra.mxu0 0.0
    %151 = vmatprep.subr.mxu0 0.0
    %152 = vmatpush1.msra.mxu0 0.0
    %153 = vmatprep.subr.mxu0 0.0
    %154 = vmatpush1.msra.mxu0 0.0
    %155 = vmatprep.subr.mxu0 0.0
    %156 = vmatpush1.msra.mxu0 0.0
    %157 = vmatprep.mubr.f32.mxu0 0.0
    %158 = vmatmul.mubr.f32.gmra.mrb[0].mxu0 %v88
    %v159 = vpop.f32.mrb[0].mxu0
    %v160 = vadd.f32 %v84, %v159
    %v161 = vpop.f32.mrb[0].mxu0
    %162 = vmatprep.mubr.f32.mxu0 0.0
    %163 = vmatmul.mubr.f32.gmra.mrb[0].mxu0 %v91
    %v164 = vpop.f32.mrb[0].mxu0
    %v165 = vadd.f32 %v84, %v164
    %v166 = vpop.f32.mrb[0].mxu0
    %167 = vdwg.mxu0
    %v168 = vld [vmem:[%s8] sm:$0xff]
    %v169 = vld [vmem:[%s8 + $0x8] sm:$0xff]
    %v170 = vld [vmem:[%s9] sm:$0x1]
    %v172 = vlaneseq
    %v173 = vshrl.u32 %v172, 7
    %v174 = vsub.s32 0, %v173
    %v175 = vrot.slane %v170, %v174
    %177 = vmatprep.subr.mxu0 0.0
    %178 = vmatpush1.msra.mxu0 %v168
    %179 = vmatprep.subr.mxu0 0.0
    %180 = vmatpush1.msra.mxu0 %v169
    %181 = vmatprep.subr.mxu0 0.0
    %182 = vmatpush1.msra.mxu0 0.0
    %183 = vmatprep.subr.mxu0 0.0
    %184 = vmatpush1.msra.mxu0 0.0
    %185 = vmatprep.subr.mxu0 0.0
    %186 = vmatpush1.msra.mxu0 0.0
    %187 = vmatprep.subr.mxu0 0.0
    %188 = vmatpush1.msra.mxu0 0.0
    %189 = vmatprep.subr.mxu0 0.0
    %190 = vmatpush1.msra.mxu0 0.0
    %191 = vmatprep.subr.mxu0 0.0
    %192 = vmatpush1.msra.mxu0 0.0
    %193 = vmatprep.subr.mxu0 0.0
    %194 = vmatpush1.msra.mxu0 0.0
    %195 = vmatprep.subr.mxu0 0.0
    %196 = vmatpush1.msra.mxu0 0.0
    %197 = vmatprep.subr.mxu0 0.0
    %198 = vmatpush1.msra.mxu0 0.0
    %199 = vmatprep.subr.mxu0 0.0
    %200 = vmatpush1.msra.mxu0 0.0
    %201 = vmatprep.subr.mxu0 0.0
    %202 = vmatpush1.msra.mxu0 0.0
    %203 = vmatprep.subr.mxu0 0.0
    %204 = vmatpush1.msra.mxu0 0.0
    %205 = vmatprep.subr.mxu0 0.0
    %206 = vmatpush1.msra.mxu0 0.0
    %207 = vmatprep.subr.mxu0 0.0
    %208 = vmatpush1.msra.mxu0 0.0
    %209 = vmatprep.subr.mxu0 0.0
    %210 = vmatpush1.msra.mxu0 0.0
    %211 = vmatprep.subr.mxu0 0.0
    %212 = vmatpush1.msra.mxu0 0.0
    %213 = vmatprep.subr.mxu0 0.0
    %214 = vmatpush1.msra.mxu0 0.0
    %215 = vmatprep.subr.mxu0 0.0
    %216 = vmatpush1.msra.mxu0 0.0
    %217 = vmatprep.subr.mxu0 0.0
    %218 = vmatpush1.msra.mxu0 0.0
    %219 = vmatprep.subr.mxu0 0.0
    %220 = vmatpush1.msra.mxu0 0.0
    %221 = vmatprep.subr.mxu0 0.0
    %222 = vmatpush1.msra.mxu0 0.0
    %223 = vmatprep.subr.mxu0 0.0
    %224 = vmatpush1.msra.mxu0 0.0
    %225 = vmatprep.subr.mxu0 0.0
    %226 = vmatpush1.msra.mxu0 0.0
    %227 = vmatprep.subr.mxu0 0.0
    %228 = vmatpush1.msra.mxu0 0.0
    %229 = vmatprep.subr.mxu0 0.0
    %230 = vmatpush1.msra.mxu0 0.0
    %231 = vmatprep.subr.mxu0 0.0
    %232 = vmatpush1.msra.mxu0 0.0
    %233 = vmatprep.subr.mxu0 0.0
    %234 = vmatpush1.msra.mxu0 0.0
    %235 = vmatprep.subr.mxu0 0.0
    %236 = vmatpush1.msra.mxu0 0.0
    %237 = vmatprep.subr.mxu0 0.0
    %238 = vmatpush1.msra.mxu0 0.0
    %239 = vmatprep.subr.mxu0 0.0
    %240 = vmatpush1.msra.mxu0 0.0
    %241 = vmatprep.mubr.f32.mxu0 0.0
    %242 = vmatmul.mubr.f32.gmra.mrb[0].mxu0 %v88
    %v243 = vpop.f32.mrb[0].mxu0
    %v244 = vadd.f32 %v175, %v243
    %v245 = vpop.f32.mrb[0].mxu0
    %246 = vmatprep.mubr.f32.mxu0 0.0
    %247 = vmatmul.mubr.f32.gmra.mrb[0].mxu0 %v91
    %v248 = vpop.f32.mrb[0].mxu0
    %v249 = vadd.f32 %v175, %v248
    %v250 = vpop.f32.mrb[0].mxu0
    %251 = vdwg.mxu0
    %v252 = vxor.u32 %v244, 2147483648
    %v253 = vxor.u32 %v249, 2147483648
    %v254 = vmul.f32 %v252, 1.442695
    %v255 = vpow.pop %v254
    %v256 = vmul.f32 %v253, 1.442695
    %v257 = vpow.pop %v256
    %v258 = vadd.f32 %v255, 1.0
    %v259 = vadd.f32 %v257, 1.0
    %v260 = vrcp.pop %v258
    %v261 = vmul.f32 1.0, %v260
    %v262 = vrcp.pop %v259
    %v263 = vmul.f32 1.0, %v262
    %v264 = vtanh.pop %v160
    %v265 = vtanh.pop %v165
    %v266 = vmul.f32 %v261, %v264
    %v267 = vmul.f32 %v263, %v265
    %268 = vst.msk [vmem:[#allocation3] sm:$0x3] %vm58, %v160
    %269 = vst.msk [vmem:[#allocation2] sm:$0x3] %vm58, %v266
    %s270 = scalar_lea.vmem [#allocation3], 2
    %vm271 = vcmask 257026
    %272 = vst.msk [vmem:[%s270 - $0x2] sm:$0xc] %vm271, %v160
    %s273 = scalar_lea.vmem [#allocation2], 2
    %274 = vst.msk [vmem:[%s273 - $0x2] sm:$0xc] %vm271, %v266
    %s275 = scalar_lea.vmem [#allocation3], 4
    %vm276 = vcmask 259076
    %277 = vst.msk [vmem:[%s275 - $0x4] sm:$0x30] %vm276, %v160
    %s278 = scalar_lea.vmem [#allocation2], 4
    %279 = vst.msk [vmem:[%s278 - $0x4] sm:$0x30] %vm276, %v266
    %s280 = scalar_lea.vmem [#allocation3], 6
    %vm281 = vcmask 261126
    %282 = vst.msk [vmem:[%s280 - $0x6] sm:$0xc0] %vm281, %v160
    %s283 = scalar_lea.vmem [#allocation2], 6
    %284 = vst.msk [vmem:[%s283 - $0x6] sm:$0xc0] %vm281, %v266
    %s285 = scalar_lea.vmem [#allocation3], 8
    %286 = vst.msk [vmem:[%s285] sm:$0x3] %vm58, %v165
    %s287 = scalar_lea.vmem [#allocation2], 8
    %288 = vst.msk [vmem:[%s287] sm:$0x3] %vm58, %v267
    %s289 = scalar_lea.vmem [#allocation3], 10
    %290 = vst.msk [vmem:[%s289 - $0x2] sm:$0xc] %vm271, %v165
    %s291 = scalar_lea.vmem [#allocation2], 10
    %292 = vst.msk [vmem:[%s291 - $0x2] sm:$0xc] %vm271, %v267
    %s293 = scalar_lea.vmem [#allocation3], 12
    %294 = vst.msk [vmem:[%s293 - $0x4] sm:$0x30] %vm276, %v165
    %s295 = scalar_lea.vmem [#allocation2], 12
    %296 = vst.msk [vmem:[%s295 - $0x4] sm:$0x30] %vm276, %v267
    %s297 = scalar_lea.vmem [#allocation3], 14
    %298 = vst.msk [vmem:[%s297 - $0x6] sm:$0xc0] %vm281, %v165
    %s299 = scalar_lea.vmem [#allocation2], 14
    %300 = vst.msk [vmem:[%s299 - $0x6] sm:$0xc0] %vm281, %v267
    loop: start=0, step=1, limit=15
    $region58: #{tree_lstm_forward_pallas.1} parent=1 // loop_pre_header
      _
    $region59: #{tree_lstm_forward_pallas.1} parent=1 // loop_header
      %s302 = sphi 0, %s306
      %p303 = scmp.ge.s32.totalorder %s302, 15
    $region60: #{tree_lstm_forward_pallas.1} parent=1 // loop_header_branch
      %305 = sbr.rel (%p303) target = $region64
    $region61: #{tree_lstm_forward_pallas.1} parent=1 // loop_body
      %s307 = smul.u32 %s302, 2
      %s308 = scalar_lea.vmem %s0, %s307
      %v309 = vld [vmem:[%s308] sm:$0x3]
      %s310 = scalar_lea.vmem %s1, %s307
      %v311 = vld [vmem:[%s310] sm:$0x3]
      %s312 = scalar_lea.vmem %s2, %s307
      %v313 = vld [vmem:[%s312] sm:$0x3]
      %vm314 = vcmp.eq.s32.totalorder %v309, 0
      %vm315 = vcmp.eq.s32.totalorder %v309, 1
      %vm316 = vcmp.eq.s32.totalorder %v313, 0
      %vm317 = vcmp.eq.s32.totalorder %v313, 1
      %vm318 = vcmp.eq.s32.totalorder %v313, 2
      %vm319 = vcmp.eq.s32.totalorder %v313, 3
      %vm320 = vcmp.eq.s32.totalorder %v313, 4
      %vm321 = vcmp.eq.s32.totalorder %v313, 5
      %vm322 = vcmp.eq.s32.totalorder %v313, 6
      %vm323 = vcmp.eq.s32.totalorder %v313, 7
      %vm324 = vcmp.eq.s32.totalorder %v311, 0
      %vm325 = vcmp.eq.s32.totalorder %v311, 1
      %vm326 = vcmp.eq.s32.totalorder %v311, 2
      %vm327 = vcmp.eq.s32.totalorder %v311, 3
      %vm328 = vcmp.eq.s32.totalorder %v311, 4
      %vm329 = vcmp.eq.s32.totalorder %v311, 5
      %vm330 = vcmp.eq.s32.totalorder %v311, 6
      %vm331 = vcmp.eq.s32.totalorder %v311, 7
      %v332 = vld [vmem:[#allocation2] sm:$0x3]
      %v333 = vld [vmem:[#allocation2 + $0x2] sm:$0x3]
      %v334 = vld [vmem:[#allocation2 + $0x4] sm:$0x3]
      %v335 = vld [vmem:[#allocation2 + $0x6] sm:$0x3]
      %v336 = vld [vmem:[#allocation2 + $0x8] sm:$0x3]
      %v337 = vld [vmem:[#allocation2 + $0xa] sm:$0x3]
      %v338 = vld [vmem:[#allocation2 + $0xc] sm:$0x3]
      %v339 = vld [vmem:[#allocation2 + $0xe] sm:$0x3]
      %v340 = vld [vmem:[#allocation3] sm:$0x3]
      %v341 = vld [vmem:[#allocation3 + $0x2] sm:$0x3]
      %v342 = vld [vmem:[#allocation3 + $0x4] sm:$0x3]
      %v343 = vld [vmem:[#allocation3 + $0x6] sm:$0x3]
      %v344 = vld [vmem:[#allocation3 + $0x8] sm:$0x3]
      %v345 = vld [vmem:[#allocation3 + $0xa] sm:$0x3]
      %v346 = vld [vmem:[#allocation3 + $0xc] sm:$0x3]
      %v347 = vld [vmem:[#allocation3 + $0xe] sm:$0x3]
      %v348 = vsel %vm324, 1, 0
      %v349 = vsel %vm325, 1, 0
      %v350 = vsel %vm326, 1, 0
      %v351 = vsel %vm327, 1, 0
      %v352 = vsel %vm328, 1, 0
      %v353 = vsel %vm329, 1, 0
      %v354 = vsel %vm330, 1, 0
      %v355 = vsel %vm331, 1, 0
      %356 = vset.pattern.permute.xlu0 0
      %357 = vperm.xlu0 %356, %v348
      %v358 = vpop.permute.xlu0 %357
      %359 = vset.pattern.permute.xlu0 0
      %360 = vperm.xlu0 %359, %v349
      %v361 = vpop.permute.xlu0 %360
      %362 = vset.pattern.permute.xlu0 0
      %363 = vperm.xlu0 %362, %v350
      %v364 = vpop.permute.xlu0 %363
      %365 = vset.pattern.permute.xlu0 0
      %366 = vperm.xlu0 %365, %v351
      %v367 = vpop.permute.xlu0 %366
      %368 = vset.pattern.permute.xlu0 0
      %369 = vperm.xlu0 %368, %v352
      %v370 = vpop.permute.xlu0 %369
      %371 = vset.pattern.permute.xlu0 0
      %372 = vperm.xlu0 %371, %v353
      %v373 = vpop.permute.xlu0 %372
      %374 = vset.pattern.permute.xlu0 0
      %375 = vperm.xlu0 %374, %v354
      %v376 = vpop.permute.xlu0 %375
      %377 = vset.pattern.permute.xlu0 0
      %378 = vperm.xlu0 %377, %v355
      %v379 = vpop.permute.xlu0 %378
      %vm380 = vcmp.eq.s32.totalorder %v358, 1
      %vm381 = vcmp.eq.s32.totalorder %v361, 1
      %vm382 = vcmp.eq.s32.totalorder %v364, 1
      %vm383 = vcmp.eq.s32.totalorder %v367, 1
      %vm384 = vcmp.eq.s32.totalorder %v370, 1
      %vm385 = vcmp.eq.s32.totalorder %v373, 1
      %vm386 = vcmp.eq.s32.totalorder %v376, 1
      %vm387 = vcmp.eq.s32.totalorder %v379, 1
      %v388 = vsel %vm380, %v332, 0.0
      %v389 = vsel %vm381, %v333, 0.0
      %v390 = vsel %vm382, %v334, 0.0
      %v391 = vsel %vm383, %v335, 0.0
      %v392 = vsel %vm384, %v336, 0.0
      %v393 = vsel %vm385, %v337, 0.0
      %v394 = vsel %vm386, %v338, 0.0
      %v395 = vsel %vm387, %v339, 0.0
      %v396 = vsel %vm58, %v388, 0.0
      %v397 = vsel %vm58, %v389, 0.0
      %v398 = vadd.f32 %v396, %v397
      %v399 = vsel %vm58, %v390, 0.0
      %v400 = vadd.f32 %v398, %v399
      %v401 = vsel %vm58, %v391, 0.0
      %v402 = vadd.f32 %v400, %v401
      %v403 = vsel %vm58, %v392, 0.0
      %v404 = vadd.f32 %v402, %v403
      %v405 = vsel %vm58, %v393, 0.0
      %v406 = vadd.f32 %v404, %v405
      %v407 = vsel %vm58, %v394, 0.0
      %v408 = vadd.f32 %v406, %v407
      %v409 = vsel %vm58, %v395, 0.0
      %v410 = vadd.f32 %v408, %v409
      %v411 = vsel %vm380, %v340, 0.0
      %v412 = vsel %vm381, %v341, 0.0
      %v413 = vsel %vm382, %v342, 0.0
      %v414 = vsel %vm383, %v343, 0.0
      %v415 = vsel %vm384, %v344, 0.0
      %v416 = vsel %vm385, %v345, 0.0
      %v417 = vsel %vm386, %v346, 0.0
      %v418 = vsel %vm387, %v347, 0.0
      %v419 = vsel %vm58, %v411, 0.0
      %v420 = vsel %vm58, %v412, 0.0
      %v421 = vadd.f32 %v419, %v420
      %v422 = vsel %vm58, %v413, 0.0
      %v423 = vadd.f32 %v421, %v422
      %v424 = vsel %vm58, %v414, 0.0
      %v425 = vadd.f32 %v423, %v424
      %v426 = vsel %vm58, %v415, 0.0
      %v427 = vadd.f32 %v425, %v426
      %v428 = vsel %vm58, %v416, 0.0
      %v429 = vadd.f32 %v427, %v428
      %v430 = vsel %vm58, %v417, 0.0
      %v431 = vadd.f32 %v429, %v430
      %v432 = vsel %vm58, %v418, 0.0
      %v433 = vadd.f32 %v431, %v432
      %v434 = vsel %vm314, 1, 0
      %vm435 = vcmp.eq.s32.totalorder %v434, 1
      %vm436 = vmand %vm316, %vm435
      %vm437 = vmand %vm317, %vm435
      %vm438 = vmand %vm318, %vm435
      %vm439 = vmand %vm319, %vm435
      %vm440 = vmand %vm320, %vm435
      %vm441 = vmand %vm321, %vm435
      %vm442 = vmand %vm322, %vm435
      %vm443 = vmand %vm323, %vm435
      %v444 = vld [vmem:[#allocation4] sm:$0x3]
      %v445 = vld [vmem:[#allocation4 + $0x2] sm:$0x3]
      %v446 = vld [vmem:[#allocation4 + $0x4] sm:$0x3]
      %v447 = vld [vmem:[#allocation4 + $0x6] sm:$0x3]
      %v448 = vld [vmem:[#allocation4 + $0x8] sm:$0x3]
      %v449 = vld [vmem:[#allocation4 + $0xa] sm:$0x3]
      %v450 = vld [vmem:[#allocation4 + $0xc] sm:$0x3]
      %v451 = vld [vmem:[#allocation4 + $0xe] sm:$0x3]
      %v452 = vsel %vm436, 1, 0
      %v453 = vsel %vm437, 1, 0
      %v454 = vsel %vm438, 1, 0
      %v455 = vsel %vm439, 1, 0
      %v456 = vsel %vm440, 1, 0
      %v457 = vsel %vm441, 1, 0
      %v458 = vsel %vm442, 1, 0
      %v459 = vsel %vm443, 1, 0
      %460 = vset.pattern.permute.xlu0 0
      %461 = vperm.xlu0 %460, %v452
      %v462 = vpop.permute.xlu0 %461
      %463 = vset.pattern.permute.xlu0 0
      %464 = vperm.xlu0 %463, %v453
      %v465 = vpop.permute.xlu0 %464
      %466 = vset.pattern.permute.xlu0 0
      %467 = vperm.xlu0 %466, %v454
      %v468 = vpop.permute.xlu0 %467
      %469 = vset.pattern.permute.xlu0 0
      %470 = vperm.xlu0 %469, %v455
      %v471 = vpop.permute.xlu0 %470
      %472 = vset.pattern.permute.xlu0 0
      %473 = vperm.xlu0 %472, %v456
      %v474 = vpop.permute.xlu0 %473
      %475 = vset.pattern.permute.xlu0 0
      %476 = vperm.xlu0 %475, %v457
      %v477 = vpop.permute.xlu0 %476
      %478 = vset.pattern.permute.xlu0 0
      %479 = vperm.xlu0 %478, %v458
      %v480 = vpop.permute.xlu0 %479
      %481 = vset.pattern.permute.xlu0 0
      %482 = vperm.xlu0 %481, %v459
      %v483 = vpop.permute.xlu0 %482
      %vm484 = vcmp.eq.s32.totalorder %v462, 1
      %vm485 = vcmp.eq.s32.totalorder %v465, 1
      %vm486 = vcmp.eq.s32.totalorder %v468, 1
      %vm487 = vcmp.eq.s32.totalorder %v471, 1
      %vm488 = vcmp.eq.s32.totalorder %v474, 1
      %vm489 = vcmp.eq.s32.totalorder %v477, 1
      %vm490 = vcmp.eq.s32.totalorder %v480, 1
      %vm491 = vcmp.eq.s32.totalorder %v483, 1
      %v492 = vsel %vm484, %v410, %v444
      %v493 = vsel %vm485, %v410, %v445
      %v494 = vsel %vm486, %v410, %v446
      %v495 = vsel %vm487, %v410, %v447
      %v496 = vsel %vm488, %v410, %v448
      %v497 = vsel %vm489, %v410, %v449
      %v498 = vsel %vm490, %v410, %v450
      %v499 = vsel %vm491, %v410, %v451
      %500 = vst.msk [vmem:[#allocation4] sm:$0x3] %vm58, %v492
      %501 = vst.msk [vmem:[#allocation4 + $0x2] sm:$0x3] %vm58, %v493
      %502 = vst.msk [vmem:[#allocation4 + $0x4] sm:$0x3] %vm58, %v494
      %503 = vst.msk [vmem:[#allocation4 + $0x6] sm:$0x3] %vm58, %v495
      %504 = vst.msk [vmem:[#allocation4 + $0x8] sm:$0x3] %vm58, %v496
      %505 = vst.msk [vmem:[#allocation4 + $0xa] sm:$0x3] %vm58, %v497
      %506 = vst.msk [vmem:[#allocation4 + $0xc] sm:$0x3] %vm58, %v498
      %507 = vst.msk [vmem:[#allocation4 + $0xe] sm:$0x3] %vm58, %v499
      %v508 = vld [vmem:[#allocation5] sm:$0x3]
      %v509 = vld [vmem:[#allocation5 + $0x2] sm:$0x3]
      %v510 = vld [vmem:[#allocation5 + $0x4] sm:$0x3]
      %v511 = vld [vmem:[#allocation5 + $0x6] sm:$0x3]
      %v512 = vld [vmem:[#allocation5 + $0x8] sm:$0x3]
      %v513 = vld [vmem:[#allocation5 + $0xa] sm:$0x3]
      %v514 = vld [vmem:[#allocation5 + $0xc] sm:$0x3]
      %v515 = vld [vmem:[#allocation5 + $0xe] sm:$0x3]
      %v516 = vsel %vm484, %v433, %v508
      %v517 = vsel %vm485, %v433, %v509
      %v518 = vsel %vm486, %v433, %v510
      %v519 = vsel %vm487, %v433, %v511
      %v520 = vsel %vm488, %v433, %v512
      %v521 = vsel %vm489, %v433, %v513
      %v522 = vsel %vm490, %v433, %v514
      %v523 = vsel %vm491, %v433, %v515
      %524 = vst.msk [vmem:[#allocation5] sm:$0x3] %vm58, %v516
      %525 = vst.msk [vmem:[#allocation5 + $0x2] sm:$0x3] %vm58, %v517
      %526 = vst.msk [vmem:[#allocation5 + $0x4] sm:$0x3] %vm58, %v518
      %527 = vst.msk [vmem:[#allocation5 + $0x6] sm:$0x3] %vm58, %v519
      %528 = vst.msk [vmem:[#allocation5 + $0x8] sm:$0x3] %vm58, %v520
      %529 = vst.msk [vmem:[#allocation5 + $0xa] sm:$0x3] %vm58, %v521
      %530 = vst.msk [vmem:[#allocation5 + $0xc] sm:$0x3] %vm58, %v522
      %531 = vst.msk [vmem:[#allocation5 + $0xe] sm:$0x3] %vm58, %v523
      %s532 = sld [smem:[#allocation6 + %s302]]
      %p533 = scmp.gt.s32.totalorder %s532, 0
      // Predicated region
      $region65: #{tree_lstm_forward_pallas.1} parent=61 // pred_check
        %p534 = pneg %p533
      $region66: #{tree_lstm_forward_pallas.1} parent=61 // pred_check_branch
        %536 = sbr.rel (%p534) target = $region68
      $region67: #{tree_lstm_forward_pallas.1} parent=61 // pred_region
        %v537 = vadd.s32 %v313, 1
        %vm538 = vcmp.eq.s32.totalorder %v537, 0
        %vm539 = vcmp.eq.s32.totalorder %v537, 1
        %vm540 = vcmp.eq.s32.totalorder %v537, 2
        %vm541 = vcmp.eq.s32.totalorder %v537, 3
        %vm542 = vcmp.eq.s32.totalorder %v537, 4
        %vm543 = vcmp.eq.s32.totalorder %v537, 5
        %vm544 = vcmp.eq.s32.totalorder %v537, 6
        %vm545 = vcmp.eq.s32.totalorder %v537, 7
        %v546 = vld [vmem:[#allocation4] sm:$0x3]
        %v547 = vld [vmem:[#allocation4 + $0x2] sm:$0x3]
        %v548 = vld [vmem:[#allocation4 + $0x4] sm:$0x3]
        %v549 = vld [vmem:[#allocation4 + $0x6] sm:$0x3]
        %v550 = vld [vmem:[#allocation4 + $0x8] sm:$0x3]
        %v551 = vld [vmem:[#allocation4 + $0xa] sm:$0x3]
        %v552 = vld [vmem:[#allocation4 + $0xc] sm:$0x3]
        %v553 = vld [vmem:[#allocation4 + $0xe] sm:$0x3]
        %v554 = vld [vmem:[#allocation5] sm:$0x3]
        %v555 = vld [vmem:[#allocation5 + $0x2] sm:$0x3]
        %v556 = vld [vmem:[#allocation5 + $0x4] sm:$0x3]
        %v557 = vld [vmem:[#allocation5 + $0x6] sm:$0x3]
        %v558 = vld [vmem:[#allocation5 + $0x8] sm:$0x3]
        %v559 = vld [vmem:[#allocation5 + $0xa] sm:$0x3]
        %v560 = vld [vmem:[#allocation5 + $0xc] sm:$0x3]
        %v561 = vld [vmem:[#allocation5 + $0xe] sm:$0x3]
        %v562 = vsel %vm316, 1, 0
        %v563 = vsel %vm317, 1, 0
        %v564 = vsel %vm318, 1, 0
        %v565 = vsel %vm319, 1, 0
        %v566 = vsel %vm320, 1, 0
        %v567 = vsel %vm321, 1, 0
        %v568 = vsel %vm322, 1, 0
        %v569 = vsel %vm323, 1, 0
        %570 = vset.pattern.permute.xlu0 0
        %571 = vperm.xlu0 %570, %v562
        %v572 = vpop.permute.xlu0 %571
        %573 = vset.pattern.permute.xlu0 0
        %574 = vperm.xlu0 %573, %v563
        %v575 = vpop.permute.xlu0 %574
        %576 = vset.pattern.permute.xlu0 0
        %577 = vperm.xlu0 %576, %v564
        %v578 = vpop.permute.xlu0 %577
        %579 = vset.pattern.permute.xlu0 0
        %580 = vperm.xlu0 %579, %v565
        %v581 = vpop.permute.xlu0 %580
        %582 = vset.pattern.permute.xlu0 0
        %583 = vperm.xlu0 %582, %v566
        %v584 = vpop.permute.xlu0 %583
        %585 = vset.pattern.permute.xlu0 0
        %586 = vperm.xlu0 %585, %v567
        %v587 = vpop.permute.xlu0 %586
        %588 = vset.pattern.permute.xlu0 0
        %589 = vperm.xlu0 %588, %v568
        %v590 = vpop.permute.xlu0 %589
        %591 = vset.pattern.permute.xlu0 0
        %592 = vperm.xlu0 %591, %v569
        %v593 = vpop.permute.xlu0 %592
        %vm594 = vcmp.eq.s32.totalorder %v572, 1
        %vm595 = vcmp.eq.s32.totalorder %v575, 1
        %vm596 = vcmp.eq.s32.totalorder %v578, 1
        %vm597 = vcmp.eq.s32.totalorder %v581, 1
        %vm598 = vcmp.eq.s32.totalorder %v584, 1
        %vm599 = vcmp.eq.s32.totalorder %v587, 1
        %vm600 = vcmp.eq.s32.totalorder %v590, 1
        %vm601 = vcmp.eq.s32.totalorder %v593, 1
        %v602 = vsel %vm594, %v546, 0.0
        %v603 = vsel %vm595, %v547, 0.0
        %v604 = vsel %vm596, %v548, 0.0
        %v605 = vsel %vm597, %v549, 0.0
        %v606 = vsel %vm598, %v550, 0.0
        %v607 = vsel %vm599, %v551, 0.0
        %v608 = vsel %vm600, %v552, 0.0
        %v609 = vsel %vm601, %v553, 0.0
        %v610 = vsel %vm58, %v602, 0.0
        %v611 = vsel %vm58, %v603, 0.0
        %v612 = vadd.f32 %v610, %v611
        %v613 = vsel %vm58, %v604, 0.0
        %v614 = vadd.f32 %v612, %v613
        %v615 = vsel %vm58, %v605, 0.0
        %v616 = vadd.f32 %v614, %v615
        %v617 = vsel %vm58, %v606, 0.0
        %v618 = vadd.f32 %v616, %v617
        %v619 = vsel %vm58, %v607, 0.0
        %v620 = vadd.f32 %v618, %v619
        %v621 = vsel %vm58, %v608, 0.0
        %v622 = vadd.f32 %v620, %v621
        %v623 = vsel %vm58, %v609, 0.0
        %v624 = vadd.f32 %v622, %v623
        %v625 = vsel %vm594, %v554, 0.0
        %v626 = vsel %vm595, %v555, 0.0
        %v627 = vsel %vm596, %v556, 0.0
        %v628 = vsel %vm597, %v557, 0.0
        %v629 = vsel %vm598, %v558, 0.0
        %v630 = vsel %vm599, %v559, 0.0
        %v631 = vsel %vm600, %v560, 0.0
        %v632 = vsel %vm601, %v561, 0.0
        %v633 = vsel %vm58, %v625, 0.0
        %v634 = vsel %vm58, %v626, 0.0
        %v635 = vadd.f32 %v633, %v634
        %v636 = vsel %vm58, %v627, 0.0
        %v637 = vadd.f32 %v635, %v636
        %v638 = vsel %vm58, %v628, 0.0
        %v639 = vadd.f32 %v637, %v638
        %v640 = vsel %vm58, %v629, 0.0
        %v641 = vadd.f32 %v639, %v640
        %v642 = vsel %vm58, %v630, 0.0
        %v643 = vadd.f32 %v641, %v642
        %v644 = vsel %vm58, %v631, 0.0
        %v645 = vadd.f32 %v643, %v644
        %v646 = vsel %vm58, %v632, 0.0
        %v647 = vadd.f32 %v645, %v646
        %v648 = vsel %vm538, 1, 0
        %v649 = vsel %vm539, 1, 0
        %v650 = vsel %vm540, 1, 0
        %v651 = vsel %vm541, 1, 0
        %v652 = vsel %vm542, 1, 0
        %v653 = vsel %vm543, 1, 0
        %v654 = vsel %vm544, 1, 0
        %v655 = vsel %vm545, 1, 0
        %656 = vset.pattern.permute.xlu0 0
        %657 = vperm.xlu0 %656, %v648
        %v658 = vpop.permute.xlu0 %657
        %659 = vset.pattern.permute.xlu0 0
        %660 = vperm.xlu0 %659, %v649
        %v661 = vpop.permute.xlu0 %660
        %662 = vset.pattern.permute.xlu0 0
        %663 = vperm.xlu0 %662, %v650
        %v664 = vpop.permute.xlu0 %663
        %665 = vset.pattern.permute.xlu0 0
        %666 = vperm.xlu0 %665, %v651
        %v667 = vpop.permute.xlu0 %666
        %668 = vset.pattern.permute.xlu0 0
        %669 = vperm.xlu0 %668, %v652
        %v670 = vpop.permute.xlu0 %669
        %671 = vset.pattern.permute.xlu0 0
        %672 = vperm.xlu0 %671, %v653
        %v673 = vpop.permute.xlu0 %672
        %674 = vset.pattern.permute.xlu0 0
        %675 = vperm.xlu0 %674, %v654
        %v676 = vpop.permute.xlu0 %675
        %677 = vset.pattern.permute.xlu0 0
        %678 = vperm.xlu0 %677, %v655
        %v679 = vpop.permute.xlu0 %678
        %vm680 = vcmp.eq.s32.totalorder %v658, 1
        %vm681 = vcmp.eq.s32.totalorder %v661, 1
        %vm682 = vcmp.eq.s32.totalorder %v664, 1
        %vm683 = vcmp.eq.s32.totalorder %v667, 1
        %vm684 = vcmp.eq.s32.totalorder %v670, 1
        %vm685 = vcmp.eq.s32.totalorder %v673, 1
        %vm686 = vcmp.eq.s32.totalorder %v676, 1
        %vm687 = vcmp.eq.s32.totalorder %v679, 1
        %v688 = vsel %vm680, %v546, 0.0
        %v689 = vsel %vm681, %v547, 0.0
        %v690 = vsel %vm682, %v548, 0.0
        %v691 = vsel %vm683, %v549, 0.0
        %v692 = vsel %vm684, %v550, 0.0
        %v693 = vsel %vm685, %v551, 0.0
        %v694 = vsel %vm686, %v552, 0.0
        %v695 = vsel %vm687, %v553, 0.0
        %v696 = vsel %vm58, %v688, 0.0
        %v697 = vsel %vm58, %v689, 0.0
        %v698 = vadd.f32 %v696, %v697
        %v699 = vsel %vm58, %v690, 0.0
        %v700 = vadd.f32 %v698, %v699
        %v701 = vsel %vm58, %v691, 0.0
        %v702 = vadd.f32 %v700, %v701
        %v703 = vsel %vm58, %v692, 0.0
        %v704 = vadd.f32 %v702, %v703
        %v705 = vsel %vm58, %v693, 0.0
        %v706 = vadd.f32 %v704, %v705
        %v707 = vsel %vm58, %v694, 0.0
        %v708 = vadd.f32 %v706, %v707
        %v709 = vsel %vm58, %v695, 0.0
        %v710 = vadd.f32 %v708, %v709
        %v711 = vsel %vm680, %v554, 0.0
        %v712 = vsel %vm681, %v555, 0.0
        %v713 = vsel %vm682, %v556, 0.0
        %v714 = vsel %vm683, %v557, 0.0
        %v715 = vsel %vm684, %v558, 0.0
        %v716 = vsel %vm685, %v559, 0.0
        %v717 = vsel %vm686, %v560, 0.0
        %v718 = vsel %vm687, %v561, 0.0
        %v719 = vsel %vm58, %v711, 0.0
        %v720 = vsel %vm58, %v712, 0.0
        %v721 = vadd.f32 %v719, %v720
        %v722 = vsel %vm58, %v713, 0.0
        %v723 = vadd.f32 %v721, %v722
        %v724 = vsel %vm58, %v714, 0.0
        %v725 = vadd.f32 %v723, %v724
        %v726 = vsel %vm58, %v715, 0.0
        %v727 = vadd.f32 %v725, %v726
        %v728 = vsel %vm58, %v716, 0.0
        %v729 = vadd.f32 %v727, %v728
        %v730 = vsel %vm58, %v717, 0.0
        %v731 = vadd.f32 %v729, %v730
        %v732 = vsel %vm58, %v718, 0.0
        %v733 = vadd.f32 %v731, %v732
        %v734 = vld [vmem:[%s10] sm:$0xff]
        %v735 = vld [vmem:[%s10 + $0x8] sm:$0xff]
        %v736 = vld [vmem:[%s10 + $0x10] sm:$0xff]
        %v737 = vld [vmem:[%s10 + $0x18] sm:$0xff]
        %v738 = vld [vmem:[%s10 + $0x20] sm:$0xff]
        %v739 = vld [vmem:[%s10 + $0x28] sm:$0xff]
        %v740 = vld [vmem:[%s10 + $0x30] sm:$0xff]
        %v741 = vld [vmem:[%s10 + $0x38] sm:$0xff]
        %v742 = vld [vmem:[%s11] sm:$0xff]
        %v743 = vld [vmem:[%s11 + $0x8] sm:$0xff]
        %v744 = vld [vmem:[%s11 + $0x10] sm:$0xff]
        %v745 = vld [vmem:[%s11 + $0x18] sm:$0xff]
        %v746 = vld [vmem:[%s11 + $0x20] sm:$0xff]
        %v747 = vld [vmem:[%s11 + $0x28] sm:$0xff]
        %v748 = vld [vmem:[%s11 + $0x30] sm:$0xff]
        %v749 = vld [vmem:[%s11 + $0x38] sm:$0xff]
        %vm750 = vcmask 261120
        %v752 = vsel %vm750, %v710, 0
        %754 = vmatprep.subr.mxu0 %v743
        %755 = vmatpush1.msra.mxu0 %v742
        %756 = vmatprep.subr.mxu0 %v745
        %757 = vmatpush1.msra.mxu0 %v744
        %758 = vmatprep.subr.mxu0 %v747
        %759 = vmatpush1.msra.mxu0 %v746
        %760 = vmatprep.subr.mxu0 %v749
        %761 = vmatpush1.msra.mxu0 %v748
        %762 = vmatprep.subr.mxu0 0.0
        %763 = vmatpush1.msra.mxu0 0.0
        %764 = vmatprep.subr.mxu0 0.0
        %765 = vmatpush1.msra.mxu0 0.0
        %766 = vmatprep.subr.mxu0 0.0
        %767 = vmatpush1.msra.mxu0 0.0
        %768 = vmatprep.subr.mxu0 0.0
        %769 = vmatpush1.msra.mxu0 0.0
        %770 = vmatprep.subr.mxu0 0.0
        %771 = vmatpush1.msra.mxu0 0.0
        %772 = vmatprep.subr.mxu0 0.0
        %773 = vmatpush1.msra.mxu0 0.0
        %774 = vmatprep.subr.mxu0 0.0
        %775 = vmatpush1.msra.mxu0 0.0
        %776 = vmatprep.subr.mxu0 0.0
        %777 = vmatpush1.msra.mxu0 0.0
        %778 = vmatprep.subr.mxu0 0.0
        %779 = vmatpush1.msra.mxu0 0.0
        %780 = vmatprep.subr.mxu0 0.0
        %781 = vmatpush1.msra.mxu0 0.0
        %782 = vmatprep.subr.mxu0 0.0
        %783 = vmatpush1.msra.mxu0 0.0
        %784 = vmatprep.subr.mxu0 0.0
        %785 = vmatpush1.msra.mxu0 0.0
        %786 = vmatprep.subr.mxu0 0.0
        %787 = vmatpush1.msra.mxu0 0.0
        %788 = vmatprep.subr.mxu0 0.0
        %789 = vmatpush1.msra.mxu0 0.0
        %790 = vmatprep.subr.mxu0 0.0
        %791 = vmatpush1.msra.mxu0 0.0
        %792 = vmatprep.subr.mxu0 0.0
        %793 = vmatpush1.msra.mxu0 0.0
        %794 = vmatprep.subr.mxu0 0.0
        %795 = vmatpush1.msra.mxu0 0.0
        %796 = vmatprep.subr.mxu0 0.0
        %797 = vmatpush1.msra.mxu0 0.0
        %798 = vmatprep.subr.mxu0 0.0
        %799 = vmatpush1.msra.mxu0 0.0
        %800 = vmatprep.subr.mxu0 0.0
        %801 = vmatpush1.msra.mxu0 0.0
        %802 = vmatprep.subr.mxu0 0.0
        %803 = vmatpush1.msra.mxu0 0.0
        %804 = vmatprep.subr.mxu0 0.0
        %805 = vmatpush1.msra.mxu0 0.0
        %806 = vmatprep.subr.mxu0 0.0
        %807 = vmatpush1.msra.mxu0 0.0
        %808 = vmatprep.subr.mxu0 0.0
        %809 = vmatpush1.msra.mxu0 0.0
        %810 = vmatprep.subr.mxu0 0.0
        %811 = vmatpush1.msra.mxu0 0.0
        %812 = vmatprep.subr.mxu0 0.0
        %813 = vmatpush1.msra.mxu0 0.0
        %814 = vmatprep.subr.mxu0 0.0
        %815 = vmatpush1.msra.mxu0 0.0
        %816 = vmatprep.subr.mxu0 0.0
        %817 = vmatpush1.msra.mxu0 0.0
        %818 = vmatprep.mubr.f32.mxu0 0.0
        %819 = vmatmul.mubr.f32.gmra.mrb[0].mxu0 %v752
        %v820 = vpop.f32.mrb[0].mxu0
        %v821 = vadd.f32 0.0, %v820
        %v822 = vpop.f32.mrb[0].mxu0
        %v823 = vadd.f32 0.0, %v822
        %824 = vdwg.mxu0
        %v826 = vsel %vm750, %v624, 0
        %828 = vmatprep.subr.mxu0 %v735
        %829 = vmatpush1.msra.mxu0 %v734
        %830 = vmatprep.subr.mxu0 %v737
        %831 = vmatpush1.msra.mxu0 %v736
        %832 = vmatprep.subr.mxu0 %v739
        %833 = vmatpush1.msra.mxu0 %v738
        %834 = vmatprep.subr.mxu0 %v741
        %835 = vmatpush1.msra.mxu0 %v740
        %836 = vmatprep.subr.mxu0 0.0
        %837 = vmatpush1.msra.mxu0 0.0
        %838 = vmatprep.subr.mxu0 0.0
        %839 = vmatpush1.msra.mxu0 0.0
        %840 = vmatprep.subr.mxu0 0.0
        %841 = vmatpush1.msra.mxu0 0.0
        %842 = vmatprep.subr.mxu0 0.0
        %843 = vmatpush1.msra.mxu0 0.0
        %844 = vmatprep.subr.mxu0 0.0
        %845 = vmatpush1.msra.mxu0 0.0
        %846 = vmatprep.subr.mxu0 0.0
        %847 = vmatpush1.msra.mxu0 0.0
        %848 = vmatprep.subr.mxu0 0.0
        %849 = vmatpush1.msra.mxu0 0.0
        %850 = vmatprep.subr.mxu0 0.0
        %851 = vmatpush1.msra.mxu0 0.0
        %852 = vmatprep.subr.mxu0 0.0
        %853 = vmatpush1.msra.mxu0 0.0
        %854 = vmatprep.subr.mxu0 0.0
        %855 = vmatpush1.msra.mxu0 0.0
        %856 = vmatprep.subr.mxu0 0.0
        %857 = vmatpush1.msra.mxu0 0.0
        %858 = vmatprep.subr.mxu0 0.0
        %859 = vmatpush1.msra.mxu0 0.0
        %860 = vmatprep.subr.mxu0 0.0
        %861 = vmatpush1.msra.mxu0 0.0
        %862 = vmatprep.subr.mxu0 0.0
        %863 = vmatpush1.msra.mxu0 0.0
        %864 = vmatprep.subr.mxu0 0.0
        %865 = vmatpush1.msra.mxu0 0.0
        %866 = vmatprep.subr.mxu0 0.0
        %867 = vmatpush1.msra.mxu0 0.0
        %868 = vmatprep.subr.mxu0 0.0
        %869 = vmatpush1.msra.mxu0 0.0
        %870 = vmatprep.subr.mxu0 0.0
        %871 = vmatpush1.msra.mxu0 0.0
        %872 = vmatprep.subr.mxu0 0.0
        %873 = vmatpush1.msra.mxu0 0.0
        %874 = vmatprep.subr.mxu0 0.0
        %875 = vmatpush1.msra.mxu0 0.0
        %876 = vmatprep.subr.mxu0 0.0
        %877 = vmatpush1.msra.mxu0 0.0
        %878 = vmatprep.subr.mxu0 0.0
        %879 = vmatpush1.msra.mxu0 0.0
        %880 = vmatprep.subr.mxu0 0.0
        %881 = vmatpush1.msra.mxu0 0.0
        %882 = vmatprep.subr.mxu0 0.0
        %883 = vmatpush1.msra.mxu0 0.0
        %884 = vmatprep.subr.mxu0 0.0
        %885 = vmatpush1.msra.mxu0 0.0
        %886 = vmatprep.subr.mxu0 0.0
        %887 = vmatpush1.msra.mxu0 0.0
        %888 = vmatprep.subr.mxu0 0.0
        %889 = vmatpush1.msra.mxu0 0.0
        %890 = vmatprep.subr.mxu0 0.0
        %891 = vmatpush1.msra.mxu0 0.0
        %892 = vmatprep.mubr.f32.mxu0 0.0
        %893 = vmatmul.mubr.f32.gmra.mrb[0].mxu0 %v826
        %v894 = vpop.f32.mrb[0].mxu0
        %v895 = vadd.f32 %v821, %v894
        %v896 = vpop.f32.mrb[0].mxu0
        %v897 = vadd.f32 %v823, %v896
        %898 = vdwg.mxu0
        %v899 = vld [vmem:[%s12] sm:$0x3]
        %v901 = vlaneseq
        %v902 = vshrl.u32 %v901, 7
        %v903 = vsub.s32 0, %v902
        %v904 = vrot.slane %v899, %v903
        %v905 = vlaneseq
        %v906 = vshrl.u32 %v905, 7
        %v907 = vsub.s32 1, %v906
        %v908 = vrot.slane %v899, %v907
        %v911 = vadd.f32 %v895, %v904
        %v912 = vadd.f32 %v897, %v908
        %v913 = vxor.u32 %v911, 2147483648
        %v914 = vmul.f32 %v913, 1.442695
        %v915 = vpow.pop %v914
        %v916 = vadd.f32 %v915, 1.0
        %v917 = vrcp.pop %v916
        %v918 = vmul.f32 1.0, %v917
        %v919 = vtanh.pop %v911
        %v920 = vxor.u32 %v912, 2147483648
        %v921 = vmul.f32 %v920, 1.442695
        %v922 = vpow.pop %v921
        %v923 = vadd.f32 %v922, 1.0
        %v924 = vrcp.pop %v923
        %v925 = vmul.f32 1.0, %v924
        %927 = vrot.lane.b32.xlu0 %v647, 32
        %v928 = vpop.permute.xlu0 %927
        %v930 = vmul.f32 %v918, %v928
        %932 = vrot.lane.b32.xlu0 %v733, 64
        %v933 = vpop.permute.xlu0 %932
        %v935 = vmul.f32 %v918, %v933
        %937 = vrot.lane.b32.xlu0 %v935, 96
        %v938 = vpop.permute.xlu0 %937
        %v940 = vadd.f32 %v930, %v938
        %942 = vrot.lane.b32.xlu0 %v919, 32
        %v943 = vpop.permute.xlu0 %942
        %v945 = vmul.f32 %v918, %v943
        %947 = vrot.lane.b32.xlu0 %v945, 32
        %v948 = vpop.permute.xlu0 %947
        %v950 = vadd.f32 %v940, %v948
        %v951 = vtanh.pop %v950
        %953 = vrot.lane.b32.xlu0 %v951, 96
        %v954 = vpop.permute.xlu0 %953
        %v956 = vmul.f32 %v925, %v954
        %v957 = vsel %vm315, 1, 0
        %vm958 = vcmp.eq.s32.totalorder %v957, 1
        %vm959 = vmand %vm316, %vm958
        %vm960 = vmand %vm317, %vm958
        %vm961 = vmand %vm318, %vm958
        %vm962 = vmand %vm319, %vm958
        %vm963 = vmand %vm320, %vm958
        %vm964 = vmand %vm321, %vm958
        %vm965 = vmand %vm322, %vm958
        %vm966 = vmand %vm323, %vm958
        %v967 = vsel %vm959, 1, 0
        %v968 = vsel %vm960, 1, 0
        %v969 = vsel %vm961, 1, 0
        %v970 = vsel %vm962, 1, 0
        %v971 = vsel %vm963, 1, 0
        %v972 = vsel %vm964, 1, 0
        %v973 = vsel %vm965, 1, 0
        %v974 = vsel %vm966, 1, 0
        %975 = vset.pattern.permute.xlu0 0
        %976 = vperm.xlu0 %975, %v967
        %v977 = vpop.permute.xlu0 %976
        %978 = vset.pattern.permute.xlu0 0
        %979 = vperm.xlu0 %978, %v968
        %v980 = vpop.permute.xlu0 %979
        %981 = vset.pattern.permute.xlu0 0
        %982 = vperm.xlu0 %981, %v969
        %v983 = vpop.permute.xlu0 %982
        %984 = vset.pattern.permute.xlu0 0
        %985 = vperm.xlu0 %984, %v970
        %v986 = vpop.permute.xlu0 %985
        %987 = vset.pattern.permute.xlu0 0
        %988 = vperm.xlu0 %987, %v971
        %v989 = vpop.permute.xlu0 %988
        %990 = vset.pattern.permute.xlu0 0
        %991 = vperm.xlu0 %990, %v972
        %v992 = vpop.permute.xlu0 %991
        %993 = vset.pattern.permute.xlu0 0
        %994 = vperm.xlu0 %993, %v973
        %v995 = vpop.permute.xlu0 %994
        %996 = vset.pattern.permute.xlu0 0
        %997 = vperm.xlu0 %996, %v974
        %v998 = vpop.permute.xlu0 %997
        %vm999 = vcmp.eq.s32.totalorder %v977, 1
        %vm1000 = vcmp.eq.s32.totalorder %v980, 1
        %vm1001 = vcmp.eq.s32.totalorder %v983, 1
        %vm1002 = vcmp.eq.s32.totalorder %v986, 1
        %vm1003 = vcmp.eq.s32.totalorder %v989, 1
        %vm1004 = vcmp.eq.s32.totalorder %v992, 1
        %vm1005 = vcmp.eq.s32.totalorder %v995, 1
        %vm1006 = vcmp.eq.s32.totalorder %v998, 1
        %v1007 = vsel %vm999, %v956, %v546
        %v1008 = vsel %vm1000, %v956, %v547
        %v1009 = vsel %vm1001, %v956, %v548
        %v1010 = vsel %vm1002, %v956, %v549
        %v1011 = vsel %vm1003, %v956, %v550
        %v1012 = vsel %vm1004, %v956, %v551
        %v1013 = vsel %vm1005, %v956, %v552
        %v1014 = vsel %vm1006, %v956, %v553
        %1015 = vst.msk [vmem:[#allocation4] sm:$0x3] %vm58, %v1007
        %1016 = vst.msk [vmem:[#allocation4 + $0x2] sm:$0x3] %vm58, %v1008
        %1017 = vst.msk [vmem:[#allocation4 + $0x4] sm:$0x3] %vm58, %v1009
        %1018 = vst.msk [vmem:[#allocation4 + $0x6] sm:$0x3] %vm58, %v1010
        %1019 = vst.msk [vmem:[#allocation4 + $0x8] sm:$0x3] %vm58, %v1011
        %1020 = vst.msk [vmem:[#allocation4 + $0xa] sm:$0x3] %vm58, %v1012
        %1021 = vst.msk [vmem:[#allocation4 + $0xc] sm:$0x3] %vm58, %v1013
        %1022 = vst.msk [vmem:[#allocation4 + $0xe] sm:$0x3] %vm58, %v1014
        %v1023 = vld [vmem:[#allocation5] sm:$0x3]
        %v1024 = vld [vmem:[#allocation5 + $0x2] sm:$0x3]
        %v1025 = vld [vmem:[#allocation5 + $0x4] sm:$0x3]
        %v1026 = vld [vmem:[#allocation5 + $0x6] sm:$0x3]
        %v1027 = vld [vmem:[#allocation5 + $0x8] sm:$0x3]
        %v1028 = vld [vmem:[#allocation5 + $0xa] sm:$0x3]
        %v1029 = vld [vmem:[#allocation5 + $0xc] sm:$0x3]
        %v1030 = vld [vmem:[#allocation5 + $0xe] sm:$0x3]
        %1039 = vrot.lane.b32.xlu0 %v1023, 32
        %v1040 = vpop.permute.xlu0 %1039
        %1041 = vrot.lane.b32.xlu0 %v1024, 32
        %v1042 = vpop.permute.xlu0 %1041
        %1043 = vrot.lane.b32.xlu0 %v1025, 32
        %v1044 = vpop.permute.xlu0 %1043
        %1045 = vrot.lane.b32.xlu0 %v1026, 32
        %v1046 = vpop.permute.xlu0 %1045
        %1047 = vrot.lane.b32.xlu0 %v1027, 32
        %v1048 = vpop.permute.xlu0 %1047
        %1049 = vrot.lane.b32.xlu0 %v1028, 32
        %v1050 = vpop.permute.xlu0 %1049
        %1051 = vrot.lane.b32.xlu0 %v1029, 32
        %v1052 = vpop.permute.xlu0 %1051
        %1053 = vrot.lane.b32.xlu0 %v1030, 32
        %v1054 = vpop.permute.xlu0 %1053
        %v1063 = vsel %vm999, %v950, %v1040
        %v1064 = vsel %vm1000, %v950, %v1042
        %v1065 = vsel %vm1001, %v950, %v1044
        %v1066 = vsel %vm1002, %v950, %v1046
        %v1067 = vsel %vm1003, %v950, %v1048
        %v1068 = vsel %vm1004, %v950, %v1050
        %v1069 = vsel %vm1005, %v950, %v1052
        %v1070 = vsel %vm1006, %v950, %v1054
        %1079 = vrot.lane.b32.xlu0 %v1063, 96
        %v1080 = vpop.permute.xlu0 %1079
        %1081 = vrot.lane.b32.xlu0 %v1064, 96
        %v1082 = vpop.permute.xlu0 %1081
        %1083 = vrot.lane.b32.xlu0 %v1065, 96
        %v1084 = vpop.permute.xlu0 %1083
        %1085 = vrot.lane.b32.xlu0 %v1066, 96
        %v1086 = vpop.permute.xlu0 %1085
        %1087 = vrot.lane.b32.xlu0 %v1067, 96
        %v1088 = vpop.permute.xlu0 %1087
        %1089 = vrot.lane.b32.xlu0 %v1068, 96
        %v1090 = vpop.permute.xlu0 %1089
        %1091 = vrot.lane.b32.xlu0 %v1069, 96
        %v1092 = vpop.permute.xlu0 %1091
        %1093 = vrot.lane.b32.xlu0 %v1070, 96
        %v1094 = vpop.permute.xlu0 %1093
        %1103 = vst.msk [vmem:[#allocation5] sm:$0x3] %vm58, %v1080
        %1104 = vst.msk [vmem:[#allocation5 + $0x2] sm:$0x3] %vm58, %v1082
        %1105 = vst.msk [vmem:[#allocation5 + $0x4] sm:$0x3] %vm58, %v1084
        %1106 = vst.msk [vmem:[#allocation5 + $0x6] sm:$0x3] %vm58, %v1086
        %1107 = vst.msk [vmem:[#allocation5 + $0x8] sm:$0x3] %vm58, %v1088
        %1108 = vst.msk [vmem:[#allocation5 + $0xa] sm:$0x3] %vm58, %v1090
        %1109 = vst.msk [vmem:[#allocation5 + $0xc] sm:$0x3] %vm58, %v1092
        %1110 = vst.msk [vmem:[#allocation5 + $0xe] sm:$0x3] %vm58, %v1094
      $region68: #{tree_lstm_forward_pallas.1} parent=61 // pred_fallthru
        _
    $region62: #{tree_lstm_forward_pallas.1} parent=1 // loop_footer
      %s306 = sadd.s32 1, %s302
    $region63: #{tree_lstm_forward_pallas.1} parent=1 // loop_footer_branch
      %301 = sbr.rel target = $region59
    $region64: #{tree_lstm_forward_pallas.1} parent=1 // loop_exit
      _
    %v1111 = vld [vmem:[%s3] sm:$0x3]
    %vm1112 = vcmp.eq.s32.totalorder %v1111, 0
    %vm1113 = vcmp.eq.s32.totalorder %v1111, 1
    %vm1114 = vcmp.eq.s32.totalorder %v1111, 2
    %vm1115 = vcmp.eq.s32.totalorder %v1111, 3
    %vm1116 = vcmp.eq.s32.totalorder %v1111, 4
    %vm1117 = vcmp.eq.s32.totalorder %v1111, 5
    %vm1118 = vcmp.eq.s32.totalorder %v1111, 6
    %vm1119 = vcmp.eq.s32.totalorder %v1111, 7
    %v1120 = vld [vmem:[#allocation4] sm:$0x3]
    %v1121 = vld [vmem:[#allocation4 + $0x2] sm:$0x3]
    %v1122 = vld [vmem:[#allocation4 + $0x4] sm:$0x3]
    %v1123 = vld [vmem:[#allocation4 + $0x6] sm:$0x3]
    %v1124 = vld [vmem:[#allocation4 + $0x8] sm:$0x3]
    %v1125 = vld [vmem:[#allocation4 + $0xa] sm:$0x3]
    %v1126 = vld [vmem:[#allocation4 + $0xc] sm:$0x3]
    %v1127 = vld [vmem:[#allocation4 + $0xe] sm:$0x3]
    %v1128 = vsel %vm1112, 1, 0
    %v1129 = vsel %vm1113, 1, 0
    %v1130 = vsel %vm1114, 1, 0
    %v1131 = vsel %vm1115, 1, 0
    %v1132 = vsel %vm1116, 1, 0
    %v1133 = vsel %vm1117, 1, 0
    %v1134 = vsel %vm1118, 1, 0
    %v1135 = vsel %vm1119, 1, 0
    %1136 = vset.pattern.permute.xlu0 0
    %1137 = vperm.xlu0 %1136, %v1128
    %v1138 = vpop.permute.xlu0 %1137
    %1139 = vset.pattern.permute.xlu0 0
    %1140 = vperm.xlu0 %1139, %v1129
    %v1141 = vpop.permute.xlu0 %1140
    %1142 = vset.pattern.permute.xlu0 0
    %1143 = vperm.xlu0 %1142, %v1130
    %v1144 = vpop.permute.xlu0 %1143
    %1145 = vset.pattern.permute.xlu0 0
    %1146 = vperm.xlu0 %1145, %v1131
    %v1147 = vpop.permute.xlu0 %1146
    %1148 = vset.pattern.permute.xlu0 0
    %1149 = vperm.xlu0 %1148, %v1132
    %v1150 = vpop.permute.xlu0 %1149
    %1151 = vset.pattern.permute.xlu0 0
    %1152 = vperm.xlu0 %1151, %v1133
    %v1153 = vpop.permute.xlu0 %1152
    %1154 = vset.pattern.permute.xlu0 0
    %1155 = vperm.xlu0 %1154, %v1134
    %v1156 = vpop.permute.xlu0 %1155
    %1157 = vset.pattern.permute.xlu0 0
    %1158 = vperm.xlu0 %1157, %v1135
    %v1159 = vpop.permute.xlu0 %1158
    %vm1160 = vcmp.eq.s32.totalorder %v1138, 1
    %vm1161 = vcmp.eq.s32.totalorder %v1141, 1
    %vm1162 = vcmp.eq.s32.totalorder %v1144, 1
    %vm1163 = vcmp.eq.s32.totalorder %v1147, 1
    %vm1164 = vcmp.eq.s32.totalorder %v1150, 1
    %vm1165 = vcmp.eq.s32.totalorder %v1153, 1
    %vm1166 = vcmp.eq.s32.totalorder %v1156, 1
    %vm1167 = vcmp.eq.s32.totalorder %v1159, 1
    %v1168 = vsel %vm1160, %v1120, 0.0
    %v1169 = vsel %vm1161, %v1121, 0.0
    %v1170 = vsel %vm1162, %v1122, 0.0
    %v1171 = vsel %vm1163, %v1123, 0.0
    %v1172 = vsel %vm1164, %v1124, 0.0
    %v1173 = vsel %vm1165, %v1125, 0.0
    %v1174 = vsel %vm1166, %v1126, 0.0
    %v1175 = vsel %vm1167, %v1127, 0.0
    %v1176 = vsel %vm58, %v1168, 0.0
    %v1177 = vsel %vm58, %v1169, 0.0
    %v1178 = vadd.f32 %v1176, %v1177
    %v1179 = vsel %vm58, %v1170, 0.0
    %v1180 = vadd.f32 %v1178, %v1179
    %v1181 = vsel %vm58, %v1171, 0.0
    %v1182 = vadd.f32 %v1180, %v1181
    %v1183 = vsel %vm58, %v1172, 0.0
    %v1184 = vadd.f32 %v1182, %v1183
    %v1185 = vsel %vm58, %v1173, 0.0
    %v1186 = vadd.f32 %v1184, %v1185
    %v1187 = vsel %vm58, %v1174, 0.0
    %v1188 = vadd.f32 %v1186, %v1187
    %v1189 = vsel %vm58, %v1175, 0.0
    %v1190 = vadd.f32 %v1188, %v1189
    %1191 = vst.msk [vmem:[#allocation9] sm:$0x3] %vm58, %v1190
    // Predicated region
    $region69: #{tree_lstm_forward_pallas.1} parent=1 // pred_check
      _
    $region70: #{tree_lstm_forward_pallas.1} parent=1 // pred_check_branch
      %1193 = sbr.rel (0) target = $region72
    $region71: #{tree_lstm_forward_pallas.1} parent=1 // pred_region
      %s1195 = ssub.s32 32, 32
      %1196 = vsyncadd [#allocation7], %s1195
      %s1198 = sshll.u32 [#allocation9], 4
      %s1199 = int_to_ptr.vmem [resolvable:$true] %s1198
      %1201 = dma.vmem_to_hbm [thread:$0]  %s1199, 32, %s13, [#allocation7]
    $region72: #{tree_lstm_forward_pallas.1} parent=1 // pred_fallthru
      _
    // Predicated region
    $region73: #{tree_lstm_forward_pallas.1} parent=1 // pred_check
      _
    $region74: #{tree_lstm_forward_pallas.1} parent=1 // pred_check_branch
      %1203 = sbr.rel (0) target = $region76
    $region75: #{tree_lstm_forward_pallas.1} parent=1 // pred_region
      %1204 = dma.done [#allocation7], 32
    $region76: #{tree_lstm_forward_pallas.1} parent=1 // pred_fallthru
      _
    %1205 = vsyncpa [#allocation7], 1
    %1206 = vsyncpa [#allocation8], 1

</llo_original>
